<compile_context>
chip_gen: v5e
topology: v5e:2x2
jax: 0.10.0
libtpu: 0.0.40
codegen_flags: <defaults>
</compile_context>

<pallas_src>
import jax
import jax.numpy as jnp
from jax.experimental import pallas as pl
from jax.experimental.pallas import tpu as pltpu


def _round8(n):
    return ((n + 7) // 8) * 8


def _section_offsets(d_in, hidden, num_layers):
    """Static row offsets of each weight section inside the packed buffer."""
    r_h = _round8(hidden)
    offs = {}
    row = 0
    offs["wih0"] = row
    row += _round8(d_in)
    offs["wihr"] = row
    row += (num_layers - 1) * r_h
    offs["whh"] = row
    row += num_layers * r_h
    offs["bias"] = row
    row += _round8(num_layers)
    offs["linw"] = row
    row += r_h
    offs["linb"] = row
    row += _round8(1)
    return offs, row, r_h


def _make_kernel(d_in, hidden, num_layers, seq_len, batch):
    offs, total_rows, r_h = _section_offsets(d_in, hidden, num_layers)
    H = hidden
    G = 4 * H
    L = seq_len
    B = batch
    NL = num_layers

    def kernel(x_ref, w_ref, convp_ref, out_ref, *gx_bufs):
        # x_ref:     (L*B, D_in)      VMEM  time-major, batch padded to 8
        # w_ref:     (total_rows, C)  VMEM  packed weights (gate order [g,i,f,o])
        # convp_ref: (L+1,)           SMEM  [conv_w[0..L-1], conv_b]
        # out_ref:   (B, C)           VMEM  lane-dense head output
        # gx_bufs:   1 or 2 × (L*B, 4H) VMEM scratch (per-layer gate inputs)

        # Layer-0 input projection for the whole sequence: one batched matmul,
        # off the sequential critical path.
        w_in0 = w_ref[offs["wih0"]:offs["wih0"] + d_in, 0:G]
        b0 = w_ref[offs["bias"]:offs["bias"] + 1, 0:G]
        gx_bufs[0][...] = (
            jnp.dot(x_ref[...], w_in0, preferred_element_type=jnp.float32) + b0)

        acc = jnp.zeros((B, H), jnp.float32)   # fused Conv2d-over-time accumulator

        for l in range(NL):                                   # static layer unroll
            cur = gx_bufs[l % 2]
            whh_r0 = offs["whh"] + l * r_h
            w_hh = w_ref[whh_r0:whh_r0 + H, 0:G]              # per-layer load
            last = l == NL - 1
            if not last:
                nxt = gx_bufs[(l + 1) % 2]
                wih_r0 = offs["wihr"] + l * r_h
                w_nx = w_ref[wih_r0:wih_r0 + H, 0:G]
                b_nx = jnp.broadcast_to(                      # hoisted broadcast
                    w_ref[offs["bias"] + l + 1:offs["bias"] + l + 2, 0:G], (B, G))

            h = jnp.zeros((B, H), jnp.float32)
            c = jnp.zeros((B, H), jnp.float32)
            for t in range(L):                                # static time unroll
                gates = cur[t * B:(t + 1) * B, :] + jnp.dot(
                    h, w_hh, preferred_element_type=jnp.float32)
                # gate columns packed [g | i | f | o]; g is lane-aligned with c/h
                g_g = jnp.tanh(gates[:, 0:H])
                sig = jax.nn.sigmoid(gates)                   # single EUP pass
                i_g = sig[:, H:2 * H]
                f_g = sig[:, 2 * H:3 * H]
                o_g = sig[:, 3 * H:4 * H]
                c = f_g * c + i_g * g_g
                h = o_g * jnp.tanh(c)
                if last:
                    # fused Conv2d((L,1)) reduction over time on tanh(s_out)
                    acc = acc + convp_ref[t] * jnp.tanh(h)
                else:
                    # Interleave the next layer's input projection: independent
                    # of the h(t)->h(t+1) chain -> fills the idle MXU.
                    nxt[t * B:(t + 1) * B, :] = (
                        jnp.dot(h, w_nx, preferred_element_type=jnp.float32)
                        + b_nx)

        feat = jnp.tanh(acc + convp_ref[L])                   # (B, H)
        w_lin = w_ref[offs["linw"]:offs["linw"] + H, :]       # (H, C), cols>=3 zero
        b_lin = w_ref[offs["linb"]:offs["linb"] + 1, :]
        out_ref[...] = jnp.tanh(
            jnp.dot(feat, w_lin, preferred_element_type=jnp.float32) + b_lin)

    return kernel, total_rows


def lstm_actor_forward(state, packed, *, hidden_size, num_layers):
    """state: (B, L, D_in) float32, batch-first like the PyTorch module."""
    w_buf, convp = packed
    B, L, d_in = state.shape
    # Pad batch to the f32 sublane multiple (8) so no vreg row is masked.
    # TODO(synk): for real workloads, stack many envs/actor instances into B
    # before this call; the serial NL*L recurrence costs the same for B=8 as
    # for B in the hundreds.
    B_pad = _round8(max(B, 8))
    x_tm = jnp.transpose(state, (1, 0, 2)).astype(jnp.float32)   # (L, B, D_in)
    if B_pad != B:
        x_tm = jnp.pad(x_tm, ((0, 0), (0, B_pad - B), (0, 0)))
    x_flat = x_tm.reshape(L * B_pad, d_in)    # layout the projection matmul wants

    kernel, total_rows = _make_kernel(d_in, hidden_size, num_layers, L, B_pad)
    assert w_buf.shape[0] == total_rows, (w_buf.shape, total_rows)
    C = w_buf.shape[1]
    num_gx = 1 if num_layers == 1 else 2      # no zero-size operands for NL==1

    vmem = pl.BlockSpec(memory_space=pltpu.MemorySpace.VMEM)
    smem = pl.BlockSpec(memory_space=pltpu.MemorySpace.SMEM)
    out = pl.pallas_call(
        kernel,
        out_shape=jax.ShapeDtypeStruct((B_pad, C), jnp.float32),
        in_specs=[vmem, vmem, smem],
        out_specs=vmem,
        scratch_shapes=[pltpu.VMEM((L * B_pad, 4 * hidden_size), jnp.float32)
                        for _ in range(num_gx)],
    )(x_flat, w_buf, convp)
    return out[:B, :3]


def init_params(key, input_size, hidden_size, num_layers, state_length):
    """Deterministic synthetic parameters with PyTorch shapes / gate order."""
    H = hidden_size
    scale = 1.0 / float(jnp.sqrt(jnp.float32(H)))
    ks = jax.random.split(key, 9)

    def u(k, shape):
        return jax.random.uniform(k, shape, jnp.float32, -scale, scale)

    wih0 = u(ks[0], (4 * H, input_size))                      # weight_ih_l0
    wihr = u(ks[1], (num_layers - 1, 4 * H, H))               # weight_ih_l{k>0}
    whh = u(ks[2], (num_layers, 4 * H, H))                    # weight_hh_l{k}
    bih = u(ks[3], (num_layers, 4 * H))
    bhh = u(ks[4], (num_layers, 4 * H))
    conv_w = u(ks[5], (state_length,))                        # Conv2d weight (1,1,L,1)
    conv_b = u(ks[6], (1,))
    lin_w = u(ks[7], (3, H))
    lin_b = u(ks[8], (3,))
    return (wih0, wihr, whh, bih, bhh, conv_w, conv_b, lin_w, lin_b)


def pack_params(raw):
    """Pack all weights into one (rows, C) VMEM buffer + one small SMEM array.

    Weights are transposed for (x @ W) form and gate columns reordered from the
    PyTorch order [i, f, g, o] to [g, i, f, o]; the linear head is zero-padded
    to a lane-dense 128-wide output.
    """
    wih0, wihr, whh, bih, bhh, conv_w, conv_b, lin_w, lin_b = raw
    NL = whh.shape[0]
    H = whh.shape[2]
    d_in = wih0.shape[1]
    G = 4 * H
    C = ((max(G, 128) + 127) // 128) * 128
    offs, total_rows, r_h = _section_offsets(d_in, H, NL)

    def reorder(x):
        # last axis is 4H with PyTorch order [i, f, g, o] -> pack as [g, i, f, o]
        i, f, g, o = jnp.split(x, 4, axis=-1)
        return jnp.concatenate([g, i, f, o], axis=-1)

    buf = jnp.zeros((total_rows, C), jnp.float32)
    buf = buf.at[offs["wih0"]:offs["wih0"] + d_in, 0:G].set(reorder(wih0.T))
    for l in range(NL - 1):
        r0 = offs["wihr"] + l * r_h
        buf = buf.at[r0:r0 + H, 0:G].set(reorder(wihr[l].T))
    for l in range(NL):
        r0 = offs["whh"] + l * r_h
        buf = buf.at[r0:r0 + H, 0:G].set(reorder(whh[l].T))
    buf = buf.at[offs["bias"]:offs["bias"] + NL, 0:G].set(reorder(bih + bhh))
    buf = buf.at[offs["linw"]:offs["linw"] + H, 0:3].set(lin_w.T)
    buf = buf.at[offs["linb"], 0:3].set(lin_b)
    convp = jnp.concatenate([conv_w, conv_b]).astype(jnp.float32)   # (L+1,)
    return (buf, convp)


def reference_forward(state, raw):
    """Pure-JAX reference mirroring the PyTorch forward (for validation)."""
    wih0, wihr, whh, bih, bhh, conv_w, conv_b, lin_w, lin_b = raw
    B, L, _ = state.shape
    NL = whh.shape[0]
    H = whh.shape[2]
    out_seq = state.astype(jnp.float32)
    for l in range(NL):
        w_i = wih0 if l == 0 else wihr[l - 1]
        w_h = whh[l]
        b = bih[l] + bhh[l]
        h = jnp.zeros((B, H), jnp.float32)
        c = jnp.zeros((B, H), jnp.float32)
        hs = []
        for t in range(L):
            g = out_seq[:, t, :] @ w_i.T + h @ w_h.T + b
            i_g = jax.nn.sigmoid(g[:, :H])
            f_g = jax.nn.sigmoid(g[:, H:2 * H])
            g_g = jnp.tanh(g[:, 2 * H:3 * H])
            o_g = jax.nn.sigmoid(g[:, 3 * H:])
            c = f_g * c + i_g * g_g
            h = o_g * jnp.tanh(c)
            hs.append(h)
        out_seq = jnp.stack(hs, axis=1)                       # (B, L, H)
    s = jnp.tanh(out_seq)
    conv_out = jnp.einsum('blh,l->bh', s, conv_w) + conv_b[0]  # (B, H)
    a = jnp.tanh(conv_out) @ lin_w.T + lin_b
    return jnp.tanh(a)


if __name__ == "__main__":
    B, L, D_in, H, NL = 2, 8, 4, 32, 2                        # state_length = L = 8
    key = jax.random.PRNGKey(0)
    k_x, k_p = jax.random.split(key)

    state = jax.random.normal(k_x, (B, L, D_in), jnp.float32)
    raw = init_params(k_p, D_in, H, NL, L)
    packed = pack_params(raw)

    out = lstm_actor_forward(state, packed, hidden_size=H, num_layers=NL)
    out = jax.block_until_ready(out)

    ref = reference_forward(state, raw)
    assert out.shape == (B, 3), out.shape
    assert jnp.allclose(out, ref, atol=1e-5, rtol=1e-5), (out, ref)
    print("KERNEL_OK")
</pallas_src>

<mosaic_0001>
module attributes {stable_mosaic.version = 11 : i64} {
  func.func @kernel(%arg0: memref<64x4xf32, #tpu.memory_space<vmem>>, %arg1: memref<152x128xf32, #tpu.memory_space<vmem>>, %arg2: memref<9xf32, #tpu.memory_space<smem>>, %arg3: memref<8x128xf32, #tpu.memory_space<vmem>>, %arg4: memref<64x128xf32, #tpu.memory_space<vmem>>, %arg5: memref<64x128xf32, #tpu.memory_space<vmem>>) attributes {dimension_semantics = [], scalar_prefetch = 0 : i64, scratch_operands = 2 : i64, tpu.core_type = #tpu.core_type<tc>} {
    %c0 = arith.constant 0 : index
    %c0_0 = arith.constant 0 : index
    %0 = vector.load %arg1[%c0, %c0_0] : memref<152x128xf32, #tpu.memory_space<vmem>>, vector<4x128xf32>
    %c104 = arith.constant 104 : index
    %c0_1 = arith.constant 0 : index
    %1 = vector.load %arg1[%c104, %c0_1] : memref<152x128xf32, #tpu.memory_space<vmem>>, vector<1x128xf32>
    %c0_2 = arith.constant 0 : index
    %c0_3 = arith.constant 0 : index
    %2 = vector.load %arg0[%c0_2, %c0_3] : memref<64x4xf32, #tpu.memory_space<vmem>>, vector<64x4xf32>
    %cst = arith.constant dense<0.000000e+00> : vector<64x128xf32>
    %3 = tpu.matmul %2, %0, %cst {dimension_numbers = #tpu.dot_dimension_numbers<[1], [0], [0], [1], [0, 0, 1, 1], [], []>} : vector<64x4xf32>, vector<4x128xf32>, vector<64x128xf32> -> vector<64x128xf32>
    %4 = vector.broadcast %1 : vector<1x128xf32> to vector<64x128xf32>
    %5 = arith.addf %3, %4 : vector<64x128xf32>
    %c0_4 = arith.constant 0 : index
    %c0_5 = arith.constant 0 : index
    %6 = vector.load %arg4[%c0_4, %c0_5] : memref<64x128xf32, #tpu.memory_space<vmem>>, vector<64x128xf32>
    tpu.vector_store %arg4[%c0_4, %c0_5], %5 {strides = array<i32>} : memref<64x128xf32, #tpu.memory_space<vmem>>, vector<64x128xf32>,
    %cst_6 = arith.constant 0.000000e+00 : f32
    %7 = vector.broadcast %cst_6 : f32 to vector<8x32xf32>
    %c40 = arith.constant 40 : index
    %c0_7 = arith.constant 0 : index
    %8 = vector.load %arg1[%c40, %c0_7] : memref<152x128xf32, #tpu.memory_space<vmem>>, vector<32x128xf32>
    %c8 = arith.constant 8 : index
    %c0_8 = arith.constant 0 : index
    %9 = vector.load %arg1[%c8, %c0_8] : memref<152x128xf32, #tpu.memory_space<vmem>>, vector<32x128xf32>
    %c105 = arith.constant 105 : index
    %c0_9 = arith.constant 0 : index
    %10 = vector.load %arg1[%c105, %c0_9] : memref<152x128xf32, #tpu.memory_space<vmem>>, vector<1x128xf32>
    %11 = vector.shape_cast %10 : vector<1x128xf32> to vector<1x128xf32>
    %12 = vector.broadcast %11 : vector<1x128xf32> to vector<8x128xf32>
    %cst_10 = arith.constant 0.000000e+00 : f32
    %13 = vector.broadcast %cst_10 : f32 to vector<8x32xf32>
    %cst_11 = arith.constant 0.000000e+00 : f32
    %14 = vector.broadcast %cst_11 : f32 to vector<8x32xf32>
    %c0_12 = arith.constant 0 : index
    %c0_13 = arith.constant 0 : index
    %15 = vector.load %arg4[%c0_12, %c0_13] : memref<64x128xf32, #tpu.memory_space<vmem>>, vector<8x128xf32>
    %cst_14 = arith.constant dense<0.000000e+00> : vector<8x128xf32>
    %16 = tpu.matmul %13, %8, %cst_14 {dimension_numbers = #tpu.dot_dimension_numbers<[1], [0], [0], [1], [0, 0, 1, 1], [], []>} : vector<8x32xf32>, vector<32x128xf32>, vector<8x128xf32> -> vector<8x128xf32>
    %17 = arith.addf %15, %16 : vector<8x128xf32>
    %18 = vector.extract_strided_slice %17 {offsets = [0, 0], sizes = [8, 32], strides = [1, 1]} : vector<8x128xf32> to vector<8x32xf32>
    %19 = math.tanh %18 : vector<8x32xf32>
    %20 = arith.negf %17 : vector<8x128xf32>
    %21 = math.exp %20 : vector<8x128xf32>
    %cst_15 = arith.constant 1.000000e+00 : f32
    %22 = vector.broadcast %cst_15 : f32 to vector<8x128xf32>
    %23 = arith.addf %22, %21 : vector<8x128xf32>
    %24 = arith.divf %22, %23 : vector<8x128xf32>
    %25 = vector.extract_strided_slice %24 {offsets = [0, 32], sizes = [8, 32], strides = [1, 1]} : vector<8x128xf32> to vector<8x32xf32>
    %26 = vector.extract_strided_slice %24 {offsets = [0, 64], sizes = [8, 32], strides = [1, 1]} : vector<8x128xf32> to vector<8x32xf32>
    %27 = vector.extract_strided_slice %24 {offsets = [0, 96], sizes = [8, 32], strides = [1, 1]} : vector<8x128xf32> to vector<8x32xf32>
    %28 = arith.mulf %26, %14 : vector<8x32xf32>
    %29 = arith.mulf %25, %19 : vector<8x32xf32>
    %30 = arith.addf %28, %29 : vector<8x32xf32>
    %31 = math.tanh %30 : vector<8x32xf32>
    %32 = arith.mulf %27, %31 : vector<8x32xf32>
    %cst_16 = arith.constant dense<0.000000e+00> : vector<8x128xf32>
    %33 = tpu.matmul %32, %9, %cst_16 {dimension_numbers = #tpu.dot_dimension_numbers<[1], [0], [0], [1], [0, 0, 1, 1], [], []>} : vector<8x32xf32>, vector<32x128xf32>, vector<8x128xf32> -> vector<8x128xf32>
    %34 = arith.addf %33, %12 : vector<8x128xf32>
    %c0_17 = arith.constant 0 : index
    %c0_18 = arith.constant 0 : index
    %35 = vector.load %arg5[%c0_17, %c0_18] : memref<64x128xf32, #tpu.memory_space<vmem>>, vector<8x128xf32>
    tpu.vector_store %arg5[%c0_17, %c0_18], %34 {strides = array<i32>} : memref<64x128xf32, #tpu.memory_space<vmem>>, vector<8x128xf32>,
    %c8_19 = arith.constant 8 : index
    %c0_20 = arith.constant 0 : index
    %36 = vector.load %arg4[%c8_19, %c0_20] : memref<64x128xf32, #tpu.memory_space<vmem>>, vector<8x128xf32>
    %cst_21 = arith.constant dense<0.000000e+00> : vector<8x128xf32>
    %37 = tpu.matmul %32, %8, %cst_21 {dimension_numbers = #tpu.dot_dimension_numbers<[1], [0], [0], [1], [0, 0, 1, 1], [], []>} : vector<8x32xf32>, vector<32x128xf32>, vector<8x128xf32> -> vector<8x128xf32>
    %38 = arith.addf %36, %37 : vector<8x128xf32>
    %39 = vector.extract_strided_slice %38 {offsets = [0, 0], sizes = [8, 32], strides = [1, 1]} : vector<8x128xf32> to vector<8x32xf32>
    %40 = math.tanh %39 : vector<8x32xf32>
    %41 = arith.negf %38 : vector<8x128xf32>
    %42 = math.exp %41 : vector<8x128xf32>
    %cst_22 = arith.constant 1.000000e+00 : f32
    %43 = vector.broadcast %cst_22 : f32 to vector<8x128xf32>
    %44 = arith.addf %43, %42 : vector<8x128xf32>
    %45 = arith.divf %43, %44 : vector<8x128xf32>
    %46 = vector.extract_strided_slice %45 {offsets = [0, 32], sizes = [8, 32], strides = [1, 1]} : vector<8x128xf32> to vector<8x32xf32>
    %47 = vector.extract_strided_slice %45 {offsets = [0, 64], sizes = [8, 32], strides = [1, 1]} : vector<8x128xf32> to vector<8x32xf32>
    %48 = vector.extract_strided_slice %45 {offsets = [0, 96], sizes = [8, 32], strides = [1, 1]} : vector<8x128xf32> to vector<8x32xf32>
    %49 = arith.mulf %47, %30 : vector<8x32xf32>
    %50 = arith.mulf %46, %40 : vector<8x32xf32>
    %51 = arith.addf %49, %50 : vector<8x32xf32>
    %52 = math.tanh %51 : vector<8x32xf32>
    %53 = arith.mulf %48, %52 : vector<8x32xf32>
    %cst_23 = arith.constant dense<0.000000e+00> : vector<8x128xf32>
    %54 = tpu.matmul %53, %9, %cst_23 {dimension_numbers = #tpu.dot_dimension_numbers<[1], [0], [0], [1], [0, 0, 1, 1], [], []>} : vector<8x32xf32>, vector<32x128xf32>, vector<8x128xf32> -> vector<8x128xf32>
    %55 = arith.addf %54, %12 : vector<8x128xf32>
    %c8_24 = arith.constant 8 : index
    %c0_25 = arith.constant 0 : index
    %56 = vector.load %arg5[%c8_24, %c0_25] : memref<64x128xf32, #tpu.memory_space<vmem>>, vector<8x128xf32>
    tpu.vector_store %arg5[%c8_24, %c0_25], %55 {strides = array<i32>} : memref<64x128xf32, #tpu.memory_space<vmem>>, vector<8x128xf32>,
    %c16 = arith.constant 16 : index
    %c0_26 = arith.constant 0 : index
    %57 = vector.load %arg4[%c16, %c0_26] : memref<64x128xf32, #tpu.memory_space<vmem>>, vector<8x128xf32>
    %cst_27 = arith.constant dense<0.000000e+00> : vector<8x128xf32>
    %58 = tpu.matmul %53, %8, %cst_27 {dimension_numbers = #tpu.dot_dimension_numbers<[1], [0], [0], [1], [0, 0, 1, 1], [], []>} : vector<8x32xf32>, vector<32x128xf32>, vector<8x128xf32> -> vector<8x128xf32>
    %59 = arith.addf %57, %58 : vector<8x128xf32>
    %60 = vector.extract_strided_slice %59 {offsets = [0, 0], sizes = [8, 32], strides = [1, 1]} : vector<8x128xf32> to vector<8x32xf32>
    %61 = math.tanh %60 : vector<8x32xf32>
    %62 = arith.negf %59 : vector<8x128xf32>
    %63 = math.exp %62 : vector<8x128xf32>
    %cst_28 = arith.constant 1.000000e+00 : f32
    %64 = vector.broadcast %cst_28 : f32 to vector<8x128xf32>
    %65 = arith.addf %64, %63 : vector<8x128xf32>
    %66 = arith.divf %64, %65 : vector<8x128xf32>
    %67 = vector.extract_strided_slice %66 {offsets = [0, 32], sizes = [8, 32], strides = [1, 1]} : vector<8x128xf32> to vector<8x32xf32>
    %68 = vector.extract_strided_slice %66 {offsets = [0, 64], sizes = [8, 32], strides = [1, 1]} : vector<8x128xf32> to vector<8x32xf32>
    %69 = vector.extract_strided_slice %66 {offsets = [0, 96], sizes = [8, 32], strides = [1, 1]} : vector<8x128xf32> to vector<8x32xf32>
    %70 = arith.mulf %68, %51 : vector<8x32xf32>
    %71 = arith.mulf %67, %61 : vector<8x32xf32>
    %72 = arith.addf %70, %71 : vector<8x32xf32>
    %73 = math.tanh %72 : vector<8x32xf32>
    %74 = arith.mulf %69, %73 : vector<8x32xf32>
    %cst_29 = arith.constant dense<0.000000e+00> : vector<8x128xf32>
    %75 = tpu.matmul %74, %9, %cst_29 {dimension_numbers = #tpu.dot_dimension_numbers<[1], [0], [0], [1], [0, 0, 1, 1], [], []>} : vector<8x32xf32>, vector<32x128xf32>, vector<8x128xf32> -> vector<8x128xf32>
    %76 = arith.addf %75, %12 : vector<8x128xf32>
    %c16_30 = arith.constant 16 : index
    %c0_31 = arith.constant 0 : index
    %77 = vector.load %arg5[%c16_30, %c0_31] : memref<64x128xf32, #tpu.memory_space<vmem>>, vector<8x128xf32>
    tpu.vector_store %arg5[%c16_30, %c0_31], %76 {strides = array<i32>} : memref<64x128xf32, #tpu.memory_space<vmem>>, vector<8x128xf32>,
    %c24 = arith.constant 24 : index
    %c0_32 = arith.constant 0 : index
    %78 = vector.load %arg4[%c24, %c0_32] : memref<64x128xf32, #tpu.memory_space<vmem>>, vector<8x128xf32>
    %cst_33 = arith.constant dense<0.000000e+00> : vector<8x128xf32>
    %79 = tpu.matmul %74, %8, %cst_33 {dimension_numbers = #tpu.dot_dimension_numbers<[1], [0], [0], [1], [0, 0, 1, 1], [], []>} : vector<8x32xf32>, vector<32x128xf32>, vector<8x128xf32> -> vector<8x128xf32>
    %80 = arith.addf %78, %79 : vector<8x128xf32>
    %81 = vector.extract_strided_slice %80 {offsets = [0, 0], sizes = [8, 32], strides = [1, 1]} : vector<8x128xf32> to vector<8x32xf32>
    %82 = math.tanh %81 : vector<8x32xf32>
    %83 = arith.negf %80 : vector<8x128xf32>
    %84 = math.exp %83 : vector<8x128xf32>
    %cst_34 = arith.constant 1.000000e+00 : f32
    %85 = vector.broadcast %cst_34 : f32 to vector<8x128xf32>
    %86 = arith.addf %85, %84 : vector<8x128xf32>
    %87 = arith.divf %85, %86 : vector<8x128xf32>
    %88 = vector.extract_strided_slice %87 {offsets = [0, 32], sizes = [8, 32], strides = [1, 1]} : vector<8x128xf32> to vector<8x32xf32>
    %89 = vector.extract_strided_slice %87 {offsets = [0, 64], sizes = [8, 32], strides = [1, 1]} : vector<8x128xf32> to vector<8x32xf32>
    %90 = vector.extract_strided_slice %87 {offsets = [0, 96], sizes = [8, 32], strides = [1, 1]} : vector<8x128xf32> to vector<8x32xf32>
    %91 = arith.mulf %89, %72 : vector<8x32xf32>
    %92 = arith.mulf %88, %82 : vector<8x32xf32>
    %93 = arith.addf %91, %92 : vector<8x32xf32>
    %94 = math.tanh %93 : vector<8x32xf32>
    %95 = arith.mulf %90, %94 : vector<8x32xf32>
    %cst_35 = arith.constant dense<0.000000e+00> : vector<8x128xf32>
    %96 = tpu.matmul %95, %9, %cst_35 {dimension_numbers = #tpu.dot_dimension_numbers<[1], [0], [0], [1], [0, 0, 1, 1], [], []>} : vector<8x32xf32>, vector<32x128xf32>, vector<8x128xf32> -> vector<8x128xf32>
    %97 = arith.addf %96, %12 : vector<8x128xf32>
    %c24_36 = arith.constant 24 : index
    %c0_37 = arith.constant 0 : index
    %98 = vector.load %arg5[%c24_36, %c0_37] : memref<64x128xf32, #tpu.memory_space<vmem>>, vector<8x128xf32>
    tpu.vector_store %arg5[%c24_36, %c0_37], %97 {strides = array<i32>} : memref<64x128xf32, #tpu.memory_space<vmem>>, vector<8x128xf32>,
    %c32 = arith.constant 32 : index
    %c0_38 = arith.constant 0 : index
    %99 = vector.load %arg4[%c32, %c0_38] : memref<64x128xf32, #tpu.memory_space<vmem>>, vector<8x128xf32>
    %cst_39 = arith.constant dense<0.000000e+00> : vector<8x128xf32>
    %100 = tpu.matmul %95, %8, %cst_39 {dimension_numbers = #tpu.dot_dimension_numbers<[1], [0], [0], [1], [0, 0, 1, 1], [], []>} : vector<8x32xf32>, vector<32x128xf32>, vector<8x128xf32> -> vector<8x128xf32>
    %101 = arith.addf %99, %100 : vector<8x128xf32>
    %102 = vector.extract_strided_slice %101 {offsets = [0, 0], sizes = [8, 32], strides = [1, 1]} : vector<8x128xf32> to vector<8x32xf32>
    %103 = math.tanh %102 : vector<8x32xf32>
    %104 = arith.negf %101 : vector<8x128xf32>
    %105 = math.exp %104 : vector<8x128xf32>
    %cst_40 = arith.constant 1.000000e+00 : f32
    %106 = vector.broadcast %cst_40 : f32 to vector<8x128xf32>
    %107 = arith.addf %106, %105 : vector<8x128xf32>
    %108 = arith.divf %106, %107 : vector<8x128xf32>
    %109 = vector.extract_strided_slice %108 {offsets = [0, 32], sizes = [8, 32], strides = [1, 1]} : vector<8x128xf32> to vector<8x32xf32>
    %110 = vector.extract_strided_slice %108 {offsets = [0, 64], sizes = [8, 32], strides = [1, 1]} : vector<8x128xf32> to vector<8x32xf32>
    %111 = vector.extract_strided_slice %108 {offsets = [0, 96], sizes = [8, 32], strides = [1, 1]} : vector<8x128xf32> to vector<8x32xf32>
    %112 = arith.mulf %110, %93 : vector<8x32xf32>
    %113 = arith.mulf %109, %103 : vector<8x32xf32>
    %114 = arith.addf %112, %113 : vector<8x32xf32>
    %115 = math.tanh %114 : vector<8x32xf32>
    %116 = arith.mulf %111, %115 : vector<8x32xf32>
    %cst_41 = arith.constant dense<0.000000e+00> : vector<8x128xf32>
    %117 = tpu.matmul %116, %9, %cst_41 {dimension_numbers = #tpu.dot_dimension_numbers<[1], [0], [0], [1], [0, 0, 1, 1], [], []>} : vector<8x32xf32>, vector<32x128xf32>, vector<8x128xf32> -> vector<8x128xf32>
    %118 = arith.addf %117, %12 : vector<8x128xf32>
    %c32_42 = arith.constant 32 : index
    %c0_43 = arith.constant 0 : index
    %119 = vector.load %arg5[%c32_42, %c0_43] : memref<64x128xf32, #tpu.memory_space<vmem>>, vector<8x128xf32>
    tpu.vector_store %arg5[%c32_42, %c0_43], %118 {strides = array<i32>} : memref<64x128xf32, #tpu.memory_space<vmem>>, vector<8x128xf32>,
    %c40_44 = arith.constant 40 : index
    %c0_45 = arith.constant 0 : index
    %120 = vector.load %arg4[%c40_44, %c0_45] : memref<64x128xf32, #tpu.memory_space<vmem>>, vector<8x128xf32>
    %cst_46 = arith.constant dense<0.000000e+00> : vector<8x128xf32>
    %121 = tpu.matmul %116, %8, %cst_46 {dimension_numbers = #tpu.dot_dimension_numbers<[1], [0], [0], [1], [0, 0, 1, 1], [], []>} : vector<8x32xf32>, vector<32x128xf32>, vector<8x128xf32> -> vector<8x128xf32>
    %122 = arith.addf %120, %121 : vector<8x128xf32>
    %123 = vector.extract_strided_slice %122 {offsets = [0, 0], sizes = [8, 32], strides = [1, 1]} : vector<8x128xf32> to vector<8x32xf32>
    %124 = math.tanh %123 : vector<8x32xf32>
    %125 = arith.negf %122 : vector<8x128xf32>
    %126 = math.exp %125 : vector<8x128xf32>
    %cst_47 = arith.constant 1.000000e+00 : f32
    %127 = vector.broadcast %cst_47 : f32 to vector<8x128xf32>
    %128 = arith.addf %127, %126 : vector<8x128xf32>
    %129 = arith.divf %127, %128 : vector<8x128xf32>
    %130 = vector.extract_strided_slice %129 {offsets = [0, 32], sizes = [8, 32], strides = [1, 1]} : vector<8x128xf32> to vector<8x32xf32>
    %131 = vector.extract_strided_slice %129 {offsets = [0, 64], sizes = [8, 32], strides = [1, 1]} : vector<8x128xf32> to vector<8x32xf32>
    %132 = vector.extract_strided_slice %129 {offsets = [0, 96], sizes = [8, 32], strides = [1, 1]} : vector<8x128xf32> to vector<8x32xf32>
    %133 = arith.mulf %131, %114 : vector<8x32xf32>
    %134 = arith.mulf %130, %124 : vector<8x32xf32>
    %135 = arith.addf %133, %134 : vector<8x32xf32>
    %136 = math.tanh %135 : vector<8x32xf32>
    %137 = arith.mulf %132, %136 : vector<8x32xf32>
    %cst_48 = arith.constant dense<0.000000e+00> : vector<8x128xf32>
    %138 = tpu.matmul %137, %9, %cst_48 {dimension_numbers = #tpu.dot_dimension_numbers<[1], [0], [0], [1], [0, 0, 1, 1], [], []>} : vector<8x32xf32>, vector<32x128xf32>, vector<8x128xf32> -> vector<8x128xf32>
    %139 = arith.addf %138, %12 : vector<8x128xf32>
    %c40_49 = arith.constant 40 : index
    %c0_50 = arith.constant 0 : index
    %140 = vector.load %arg5[%c40_49, %c0_50] : memref<64x128xf32, #tpu.memory_space<vmem>>, vector<8x128xf32>
    tpu.vector_store %arg5[%c40_49, %c0_50], %139 {strides = array<i32>} : memref<64x128xf32, #tpu.memory_space<vmem>>, vector<8x128xf32>,
    %c48 = arith.constant 48 : index
    %c0_51 = arith.constant 0 : index
    %141 = vector.load %arg4[%c48, %c0_51] : memref<64x128xf32, #tpu.memory_space<vmem>>, vector<8x128xf32>
    %cst_52 = arith.constant dense<0.000000e+00> : vector<8x128xf32>
    %142 = tpu.matmul %137, %8, %cst_52 {dimension_numbers = #tpu.dot_dimension_numbers<[1], [0], [0], [1], [0, 0, 1, 1], [], []>} : vector<8x32xf32>, vector<32x128xf32>, vector<8x128xf32> -> vector<8x128xf32>
    %143 = arith.addf %141, %142 : vector<8x128xf32>
    %144 = vector.extract_strided_slice %143 {offsets = [0, 0], sizes = [8, 32], strides = [1, 1]} : vector<8x128xf32> to vector<8x32xf32>
    %145 = math.tanh %144 : vector<8x32xf32>
    %146 = arith.negf %143 : vector<8x128xf32>
    %147 = math.exp %146 : vector<8x128xf32>
    %cst_53 = arith.constant 1.000000e+00 : f32
    %148 = vector.broadcast %cst_53 : f32 to vector<8x128xf32>
    %149 = arith.addf %148, %147 : vector<8x128xf32>
    %150 = arith.divf %148, %149 : vector<8x128xf32>
    %151 = vector.extract_strided_slice %150 {offsets = [0, 32], sizes = [8, 32], strides = [1, 1]} : vector<8x128xf32> to vector<8x32xf32>
    %152 = vector.extract_strided_slice %150 {offsets = [0, 64], sizes = [8, 32], strides = [1, 1]} : vector<8x128xf32> to vector<8x32xf32>
    %153 = vector.extract_strided_slice %150 {offsets = [0, 96], sizes = [8, 32], strides = [1, 1]} : vector<8x128xf32> to vector<8x32xf32>
    %154 = arith.mulf %152, %135 : vector<8x32xf32>
    %155 = arith.mulf %151, %145 : vector<8x32xf32>
    %156 = arith.addf %154, %155 : vector<8x32xf32>
    %157 = math.tanh %156 : vector<8x32xf32>
    %158 = arith.mulf %153, %157 : vector<8x32xf32>
    %cst_54 = arith.constant dense<0.000000e+00> : vector<8x128xf32>
    %159 = tpu.matmul %158, %9, %cst_54 {dimension_numbers = #tpu.dot_dimension_numbers<[1], [0], [0], [1], [0, 0, 1, 1], [], []>} : vector<8x32xf32>, vector<32x128xf32>, vector<8x128xf32> -> vector<8x128xf32>
    %160 = arith.addf %159, %12 : vector<8x128xf32>
    %c48_55 = arith.constant 48 : index
    %c0_56 = arith.constant 0 : index
    %161 = vector.load %arg5[%c48_55, %c0_56] : memref<64x128xf32, #tpu.memory_space<vmem>>, vector<8x128xf32>
    tpu.vector_store %arg5[%c48_55, %c0_56], %160 {strides = array<i32>} : memref<64x128xf32, #tpu.memory_space<vmem>>, vector<8x128xf32>,
    %c56 = arith.constant 56 : index
    %c0_57 = arith.constant 0 : index
    %162 = vector.load %arg4[%c56, %c0_57] : memref<64x128xf32, #tpu.memory_space<vmem>>, vector<8x128xf32>
    %cst_58 = arith.constant dense<0.000000e+00> : vector<8x128xf32>
    %163 = tpu.matmul %158, %8, %cst_58 {dimension_numbers = #tpu.dot_dimension_numbers<[1], [0], [0], [1], [0, 0, 1, 1], [], []>} : vector<8x32xf32>, vector<32x128xf32>, vector<8x128xf32> -> vector<8x128xf32>
    %164 = arith.addf %162, %163 : vector<8x128xf32>
    %165 = vector.extract_strided_slice %164 {offsets = [0, 0], sizes = [8, 32], strides = [1, 1]} : vector<8x128xf32> to vector<8x32xf32>
    %166 = math.tanh %165 : vector<8x32xf32>
    %167 = arith.negf %164 : vector<8x128xf32>
    %168 = math.exp %167 : vector<8x128xf32>
    %cst_59 = arith.constant 1.000000e+00 : f32
    %169 = vector.broadcast %cst_59 : f32 to vector<8x128xf32>
    %170 = arith.addf %169, %168 : vector<8x128xf32>
    %171 = arith.divf %169, %170 : vector<8x128xf32>
    %172 = vector.extract_strided_slice %171 {offsets = [0, 32], sizes = [8, 32], strides = [1, 1]} : vector<8x128xf32> to vector<8x32xf32>
    %173 = vector.extract_strided_slice %171 {offsets = [0, 64], sizes = [8, 32], strides = [1, 1]} : vector<8x128xf32> to vector<8x32xf32>
    %174 = vector.extract_strided_slice %171 {offsets = [0, 96], sizes = [8, 32], strides = [1, 1]} : vector<8x128xf32> to vector<8x32xf32>
    %175 = arith.mulf %173, %156 : vector<8x32xf32>
    %176 = arith.mulf %172, %166 : vector<8x32xf32>
    %177 = arith.addf %175, %176 : vector<8x32xf32>
    %178 = math.tanh %177 : vector<8x32xf32>
    %179 = arith.mulf %174, %178 : vector<8x32xf32>
    %cst_60 = arith.constant dense<0.000000e+00> : vector<8x128xf32>
    %180 = tpu.matmul %179, %9, %cst_60 {dimension_numbers = #tpu.dot_dimension_numbers<[1], [0], [0], [1], [0, 0, 1, 1], [], []>} : vector<8x32xf32>, vector<32x128xf32>, vector<8x128xf32> -> vector<8x128xf32>
    %181 = arith.addf %180, %12 : vector<8x128xf32>
    %c56_61 = arith.constant 56 : index
    %c0_62 = arith.constant 0 : index
    %182 = vector.load %arg5[%c56_61, %c0_62] : memref<64x128xf32, #tpu.memory_space<vmem>>, vector<8x128xf32>
    tpu.vector_store %arg5[%c56_61, %c0_62], %181 {strides = array<i32>} : memref<64x128xf32, #tpu.memory_space<vmem>>, vector<8x128xf32>,
    %c72 = arith.constant 72 : index
    %c0_63 = arith.constant 0 : index
    %183 = vector.load %arg1[%c72, %c0_63] : memref<152x128xf32, #tpu.memory_space<vmem>>, vector<32x128xf32>
    %cst_64 = arith.constant 0.000000e+00 : f32
    %184 = vector.broadcast %cst_64 : f32 to vector<8x32xf32>
    %cst_65 = arith.constant 0.000000e+00 : f32
    %185 = vector.broadcast %cst_65 : f32 to vector<8x32xf32>
    %c0_66 = arith.constant 0 : index
    %c0_67 = arith.constant 0 : index
    %186 = vector.load %arg5[%c0_66, %c0_67] : memref<64x128xf32, #tpu.memory_space<vmem>>, vector<8x128xf32>
    %cst_68 = arith.constant dense<0.000000e+00> : vector<8x128xf32>
    %187 = tpu.matmul %184, %183, %cst_68 {dimension_numbers = #tpu.dot_dimension_numbers<[1], [0], [0], [1], [0, 0, 1, 1], [], []>} : vector<8x32xf32>, vector<32x128xf32>, vector<8x128xf32> -> vector<8x128xf32>
    %188 = arith.addf %186, %187 : vector<8x128xf32>
    %189 = vector.extract_strided_slice %188 {offsets = [0, 0], sizes = [8, 32], strides = [1, 1]} : vector<8x128xf32> to vector<8x32xf32>
    %190 = math.tanh %189 : vector<8x32xf32>
    %191 = arith.negf %188 : vector<8x128xf32>
    %192 = math.exp %191 : vector<8x128xf32>
    %cst_69 = arith.constant 1.000000e+00 : f32
    %193 = vector.broadcast %cst_69 : f32 to vector<8x128xf32>
    %194 = arith.addf %193, %192 : vector<8x128xf32>
    %195 = arith.divf %193, %194 : vector<8x128xf32>
    %196 = vector.extract_strided_slice %195 {offsets = [0, 32], sizes = [8, 32], strides = [1, 1]} : vector<8x128xf32> to vector<8x32xf32>
    %197 = vector.extract_strided_slice %195 {offsets = [0, 64], sizes = [8, 32], strides = [1, 1]} : vector<8x128xf32> to vector<8x32xf32>
    %198 = vector.extract_strided_slice %195 {offsets = [0, 96], sizes = [8, 32], strides = [1, 1]} : vector<8x128xf32> to vector<8x32xf32>
    %199 = arith.mulf %197, %185 : vector<8x32xf32>
    %200 = arith.mulf %196, %190 : vector<8x32xf32>
    %201 = arith.addf %199, %200 : vector<8x32xf32>
    %202 = math.tanh %201 : vector<8x32xf32>
    %203 = arith.mulf %198, %202 : vector<8x32xf32>
    %c0_70 = arith.constant 0 : index
    %204 = memref.load %arg2[%c0_70] : memref<9xf32, #tpu.memory_space<smem>>
    %205 = math.tanh %203 : vector<8x32xf32>
    %206 = vector.broadcast %204 : f32 to vector<8x32xf32>
    %207 = arith.mulf %206, %205 : vector<8x32xf32>
    %208 = arith.addf %7, %207 : vector<8x32xf32>
    %c8_71 = arith.constant 8 : index
    %c0_72 = arith.constant 0 : index
    %209 = vector.load %arg5[%c8_71, %c0_72] : memref<64x128xf32, #tpu.memory_space<vmem>>, vector<8x128xf32>
    %cst_73 = arith.constant dense<0.000000e+00> : vector<8x128xf32>
    %210 = tpu.matmul %203, %183, %cst_73 {dimension_numbers = #tpu.dot_dimension_numbers<[1], [0], [0], [1], [0, 0, 1, 1], [], []>} : vector<8x32xf32>, vector<32x128xf32>, vector<8x128xf32> -> vector<8x128xf32>
    %211 = arith.addf %209, %210 : vector<8x128xf32>
    %212 = vector.extract_strided_slice %211 {offsets = [0, 0], sizes = [8, 32], strides = [1, 1]} : vector<8x128xf32> to vector<8x32xf32>
    %213 = math.tanh %212 : vector<8x32xf32>
    %214 = arith.negf %211 : vector<8x128xf32>
    %215 = math.exp %214 : vector<8x128xf32>
    %cst_74 = arith.constant 1.000000e+00 : f32
    %216 = vector.broadcast %cst_74 : f32 to vector<8x128xf32>
    %217 = arith.addf %216, %215 : vector<8x128xf32>
    %218 = arith.divf %216, %217 : vector<8x128xf32>
    %219 = vector.extract_strided_slice %218 {offsets = [0, 32], sizes = [8, 32], strides = [1, 1]} : vector<8x128xf32> to vector<8x32xf32>
    %220 = vector.extract_strided_slice %218 {offsets = [0, 64], sizes = [8, 32], strides = [1, 1]} : vector<8x128xf32> to vector<8x32xf32>
    %221 = vector.extract_strided_slice %218 {offsets = [0, 96], sizes = [8, 32], strides = [1, 1]} : vector<8x128xf32> to vector<8x32xf32>
    %222 = arith.mulf %220, %201 : vector<8x32xf32>
    %223 = arith.mulf %219, %213 : vector<8x32xf32>
    %224 = arith.addf %222, %223 : vector<8x32xf32>
    %225 = math.tanh %224 : vector<8x32xf32>
    %226 = arith.mulf %221, %225 : vector<8x32xf32>
    %c1 = arith.constant 1 : index
    %227 = memref.load %arg2[%c1] : memref<9xf32, #tpu.memory_space<smem>>
    %228 = math.tanh %226 : vector<8x32xf32>
    %229 = vector.broadcast %227 : f32 to vector<8x32xf32>
    %230 = arith.mulf %229, %228 : vector<8x32xf32>
    %231 = arith.addf %208, %230 : vector<8x32xf32>
    %c16_75 = arith.constant 16 : index
    %c0_76 = arith.constant 0 : index
    %232 = vector.load %arg5[%c16_75, %c0_76] : memref<64x128xf32, #tpu.memory_space<vmem>>, vector<8x128xf32>
    %cst_77 = arith.constant dense<0.000000e+00> : vector<8x128xf32>
    %233 = tpu.matmul %226, %183, %cst_77 {dimension_numbers = #tpu.dot_dimension_numbers<[1], [0], [0], [1], [0, 0, 1, 1], [], []>} : vector<8x32xf32>, vector<32x128xf32>, vector<8x128xf32> -> vector<8x128xf32>
    %234 = arith.addf %232, %233 : vector<8x128xf32>
    %235 = vector.extract_strided_slice %234 {offsets = [0, 0], sizes = [8, 32], strides = [1, 1]} : vector<8x128xf32> to vector<8x32xf32>
    %236 = math.tanh %235 : vector<8x32xf32>
    %237 = arith.negf %234 : vector<8x128xf32>
    %238 = math.exp %237 : vector<8x128xf32>
    %cst_78 = arith.constant 1.000000e+00 : f32
    %239 = vector.broadcast %cst_78 : f32 to vector<8x128xf32>
    %240 = arith.addf %239, %238 : vector<8x128xf32>
    %241 = arith.divf %239, %240 : vector<8x128xf32>
    %242 = vector.extract_strided_slice %241 {offsets = [0, 32], sizes = [8, 32], strides = [1, 1]} : vector<8x128xf32> to vector<8x32xf32>
    %243 = vector.extract_strided_slice %241 {offsets = [0, 64], sizes = [8, 32], strides = [1, 1]} : vector<8x128xf32> to vector<8x32xf32>
    %244 = vector.extract_strided_slice %241 {offsets = [0, 96], sizes = [8, 32], strides = [1, 1]} : vector<8x128xf32> to vector<8x32xf32>
    %245 = arith.mulf %243, %224 : vector<8x32xf32>
    %246 = arith.mulf %242, %236 : vector<8x32xf32>
    %247 = arith.addf %245, %246 : vector<8x32xf32>
    %248 = math.tanh %247 : vector<8x32xf32>
    %249 = arith.mulf %244, %248 : vector<8x32xf32>
    %c2 = arith.constant 2 : index
    %250 = memref.load %arg2[%c2] : memref<9xf32, #tpu.memory_space<smem>>
    %251 = math.tanh %249 : vector<8x32xf32>
    %252 = vector.broadcast %250 : f32 to vector<8x32xf32>
    %253 = arith.mulf %252, %251 : vector<8x32xf32>
    %254 = arith.addf %231, %253 : vector<8x32xf32>
    %c24_79 = arith.constant 24 : index
    %c0_80 = arith.constant 0 : index
    %255 = vector.load %arg5[%c24_79, %c0_80] : memref<64x128xf32, #tpu.memory_space<vmem>>, vector<8x128xf32>
    %cst_81 = arith.constant dense<0.000000e+00> : vector<8x128xf32>
    %256 = tpu.matmul %249, %183, %cst_81 {dimension_numbers = #tpu.dot_dimension_numbers<[1], [0], [0], [1], [0, 0, 1, 1], [], []>} : vector<8x32xf32>, vector<32x128xf32>, vector<8x128xf32> -> vector<8x128xf32>
    %257 = arith.addf %255, %256 : vector<8x128xf32>
    %258 = vector.extract_strided_slice %257 {offsets = [0, 0], sizes = [8, 32], strides = [1, 1]} : vector<8x128xf32> to vector<8x32xf32>
    %259 = math.tanh %258 : vector<8x32xf32>
    %260 = arith.negf %257 : vector<8x128xf32>
    %261 = math.exp %260 : vector<8x128xf32>
    %cst_82 = arith.constant 1.000000e+00 : f32
    %262 = vector.broadcast %cst_82 : f32 to vector<8x128xf32>
    %263 = arith.addf %262, %261 : vector<8x128xf32>
    %264 = arith.divf %262, %263 : vector<8x128xf32>
    %265 = vector.extract_strided_slice %264 {offsets = [0, 32], sizes = [8, 32], strides = [1, 1]} : vector<8x128xf32> to vector<8x32xf32>
    %266 = vector.extract_strided_slice %264 {offsets = [0, 64], sizes = [8, 32], strides = [1, 1]} : vector<8x128xf32> to vector<8x32xf32>
    %267 = vector.extract_strided_slice %264 {offsets = [0, 96], sizes = [8, 32], strides = [1, 1]} : vector<8x128xf32> to vector<8x32xf32>
    %268 = arith.mulf %266, %247 : vector<8x32xf32>
    %269 = arith.mulf %265, %259 : vector<8x32xf32>
    %270 = arith.addf %268, %269 : vector<8x32xf32>
    %271 = math.tanh %270 : vector<8x32xf32>
    %272 = arith.mulf %267, %271 : vector<8x32xf32>
    %c3 = arith.constant 3 : index
    %273 = memref.load %arg2[%c3] : memref<9xf32, #tpu.memory_space<smem>>
    %274 = math.tanh %272 : vector<8x32xf32>
    %275 = vector.broadcast %273 : f32 to vector<8x32xf32>
    %276 = arith.mulf %275, %274 : vector<8x32xf32>
    %277 = arith.addf %254, %276 : vector<8x32xf32>
    %c32_83 = arith.constant 32 : index
    %c0_84 = arith.constant 0 : index
    %278 = vector.load %arg5[%c32_83, %c0_84] : memref<64x128xf32, #tpu.memory_space<vmem>>, vector<8x128xf32>
    %cst_85 = arith.constant dense<0.000000e+00> : vector<8x128xf32>
    %279 = tpu.matmul %272, %183, %cst_85 {dimension_numbers = #tpu.dot_dimension_numbers<[1], [0], [0], [1], [0, 0, 1, 1], [], []>} : vector<8x32xf32>, vector<32x128xf32>, vector<8x128xf32> -> vector<8x128xf32>
    %280 = arith.addf %278, %279 : vector<8x128xf32>
    %281 = vector.extract_strided_slice %280 {offsets = [0, 0], sizes = [8, 32], strides = [1, 1]} : vector<8x128xf32> to vector<8x32xf32>
    %282 = math.tanh %281 : vector<8x32xf32>
    %283 = arith.negf %280 : vector<8x128xf32>
    %284 = math.exp %283 : vector<8x128xf32>
    %cst_86 = arith.constant 1.000000e+00 : f32
    %285 = vector.broadcast %cst_86 : f32 to vector<8x128xf32>
    %286 = arith.addf %285, %284 : vector<8x128xf32>
    %287 = arith.divf %285, %286 : vector<8x128xf32>
    %288 = vector.extract_strided_slice %287 {offsets = [0, 32], sizes = [8, 32], strides = [1, 1]} : vector<8x128xf32> to vector<8x32xf32>
    %289 = vector.extract_strided_slice %287 {offsets = [0, 64], sizes = [8, 32], strides = [1, 1]} : vector<8x128xf32> to vector<8x32xf32>
    %290 = vector.extract_strided_slice %287 {offsets = [0, 96], sizes = [8, 32], strides = [1, 1]} : vector<8x128xf32> to vector<8x32xf32>
    %291 = arith.mulf %289, %270 : vector<8x32xf32>
    %292 = arith.mulf %288, %282 : vector<8x32xf32>
    %293 = arith.addf %291, %292 : vector<8x32xf32>
    %294 = math.tanh %293 : vector<8x32xf32>
    %295 = arith.mulf %290, %294 : vector<8x32xf32>
    %c4 = arith.constant 4 : index
    %296 = memref.load %arg2[%c4] : memref<9xf32, #tpu.memory_space<smem>>
    %297 = math.tanh %295 : vector<8x32xf32>
    %298 = vector.broadcast %296 : f32 to vector<8x32xf32>
    %299 = arith.mulf %298, %297 : vector<8x32xf32>
    %300 = arith.addf %277, %299 : vector<8x32xf32>
    %c40_87 = arith.constant 40 : index
    %c0_88 = arith.constant 0 : index
    %301 = vector.load %arg5[%c40_87, %c0_88] : memref<64x128xf32, #tpu.memory_space<vmem>>, vector<8x128xf32>
    %cst_89 = arith.constant dense<0.000000e+00> : vector<8x128xf32>
    %302 = tpu.matmul %295, %183, %cst_89 {dimension_numbers = #tpu.dot_dimension_numbers<[1], [0], [0], [1], [0, 0, 1, 1], [], []>} : vector<8x32xf32>, vector<32x128xf32>, vector<8x128xf32> -> vector<8x128xf32>
    %303 = arith.addf %301, %302 : vector<8x128xf32>
    %304 = vector.extract_strided_slice %303 {offsets = [0, 0], sizes = [8, 32], strides = [1, 1]} : vector<8x128xf32> to vector<8x32xf32>
    %305 = math.tanh %304 : vector<8x32xf32>
    %306 = arith.negf %303 : vector<8x128xf32>
    %307 = math.exp %306 : vector<8x128xf32>
    %cst_90 = arith.constant 1.000000e+00 : f32
    %308 = vector.broadcast %cst_90 : f32 to vector<8x128xf32>
    %309 = arith.addf %308, %307 : vector<8x128xf32>
    %310 = arith.divf %308, %309 : vector<8x128xf32>
    %311 = vector.extract_strided_slice %310 {offsets = [0, 32], sizes = [8, 32], strides = [1, 1]} : vector<8x128xf32> to vector<8x32xf32>
    %312 = vector.extract_strided_slice %310 {offsets = [0, 64], sizes = [8, 32], strides = [1, 1]} : vector<8x128xf32> to vector<8x32xf32>
    %313 = vector.extract_strided_slice %310 {offsets = [0, 96], sizes = [8, 32], strides = [1, 1]} : vector<8x128xf32> to vector<8x32xf32>
    %314 = arith.mulf %312, %293 : vector<8x32xf32>
    %315 = arith.mulf %311, %305 : vector<8x32xf32>
    %316 = arith.addf %314, %315 : vector<8x32xf32>
    %317 = math.tanh %316 : vector<8x32xf32>
    %318 = arith.mulf %313, %317 : vector<8x32xf32>
    %c5 = arith.constant 5 : index
    %319 = memref.load %arg2[%c5] : memref<9xf32, #tpu.memory_space<smem>>
    %320 = math.tanh %318 : vector<8x32xf32>
    %321 = vector.broadcast %319 : f32 to vector<8x32xf32>
    %322 = arith.mulf %321, %320 : vector<8x32xf32>
    %323 = arith.addf %300, %322 : vector<8x32xf32>
    %c48_91 = arith.constant 48 : index
    %c0_92 = arith.constant 0 : index
    %324 = vector.load %arg5[%c48_91, %c0_92] : memref<64x128xf32, #tpu.memory_space<vmem>>, vector<8x128xf32>
    %cst_93 = arith.constant dense<0.000000e+00> : vector<8x128xf32>
    %325 = tpu.matmul %318, %183, %cst_93 {dimension_numbers = #tpu.dot_dimension_numbers<[1], [0], [0], [1], [0, 0, 1, 1], [], []>} : vector<8x32xf32>, vector<32x128xf32>, vector<8x128xf32> -> vector<8x128xf32>
    %326 = arith.addf %324, %325 : vector<8x128xf32>
    %327 = vector.extract_strided_slice %326 {offsets = [0, 0], sizes = [8, 32], strides = [1, 1]} : vector<8x128xf32> to vector<8x32xf32>
    %328 = math.tanh %327 : vector<8x32xf32>
    %329 = arith.negf %326 : vector<8x128xf32>
    %330 = math.exp %329 : vector<8x128xf32>
    %cst_94 = arith.constant 1.000000e+00 : f32
    %331 = vector.broadcast %cst_94 : f32 to vector<8x128xf32>
    %332 = arith.addf %331, %330 : vector<8x128xf32>
    %333 = arith.divf %331, %332 : vector<8x128xf32>
    %334 = vector.extract_strided_slice %333 {offsets = [0, 32], sizes = [8, 32], strides = [1, 1]} : vector<8x128xf32> to vector<8x32xf32>
    %335 = vector.extract_strided_slice %333 {offsets = [0, 64], sizes = [8, 32], strides = [1, 1]} : vector<8x128xf32> to vector<8x32xf32>
    %336 = vector.extract_strided_slice %333 {offsets = [0, 96], sizes = [8, 32], strides = [1, 1]} : vector<8x128xf32> to vector<8x32xf32>
    %337 = arith.mulf %335, %316 : vector<8x32xf32>
    %338 = arith.mulf %334, %328 : vector<8x32xf32>
    %339 = arith.addf %337, %338 : vector<8x32xf32>
    %340 = math.tanh %339 : vector<8x32xf32>
    %341 = arith.mulf %336, %340 : vector<8x32xf32>
    %c6 = arith.constant 6 : index
    %342 = memref.load %arg2[%c6] : memref<9xf32, #tpu.memory_space<smem>>
    %343 = math.tanh %341 : vector<8x32xf32>
    %344 = vector.broadcast %342 : f32 to vector<8x32xf32>
    %345 = arith.mulf %344, %343 : vector<8x32xf32>
    %346 = arith.addf %323, %345 : vector<8x32xf32>
    %c56_95 = arith.constant 56 : index
    %c0_96 = arith.constant 0 : index
    %347 = vector.load %arg5[%c56_95, %c0_96] : memref<64x128xf32, #tpu.memory_space<vmem>>, vector<8x128xf32>
    %cst_97 = arith.constant dense<0.000000e+00> : vector<8x128xf32>
    %348 = tpu.matmul %341, %183, %cst_97 {dimension_numbers = #tpu.dot_dimension_numbers<[1], [0], [0], [1], [0, 0, 1, 1], [], []>} : vector<8x32xf32>, vector<32x128xf32>, vector<8x128xf32> -> vector<8x128xf32>
    %349 = arith.addf %347, %348 : vector<8x128xf32>
    %350 = vector.extract_strided_slice %349 {offsets = [0, 0], sizes = [8, 32], strides = [1, 1]} : vector<8x128xf32> to vector<8x32xf32>
    %351 = math.tanh %350 : vector<8x32xf32>
    %352 = arith.negf %349 : vector<8x128xf32>
    %353 = math.exp %352 : vector<8x128xf32>
    %cst_98 = arith.constant 1.000000e+00 : f32
    %354 = vector.broadcast %cst_98 : f32 to vector<8x128xf32>
    %355 = arith.addf %354, %353 : vector<8x128xf32>
    %356 = arith.divf %354, %355 : vector<8x128xf32>
    %357 = vector.extract_strided_slice %356 {offsets = [0, 32], sizes = [8, 32], strides = [1, 1]} : vector<8x128xf32> to vector<8x32xf32>
    %358 = vector.extract_strided_slice %356 {offsets = [0, 64], sizes = [8, 32], strides = [1, 1]} : vector<8x128xf32> to vector<8x32xf32>
    %359 = vector.extract_strided_slice %356 {offsets = [0, 96], sizes = [8, 32], strides = [1, 1]} : vector<8x128xf32> to vector<8x32xf32>
    %360 = arith.mulf %358, %339 : vector<8x32xf32>
    %361 = arith.mulf %357, %351 : vector<8x32xf32>
    %362 = arith.addf %360, %361 : vector<8x32xf32>
    %363 = math.tanh %362 : vector<8x32xf32>
    %364 = arith.mulf %359, %363 : vector<8x32xf32>
    %c7 = arith.constant 7 : index
    %365 = memref.load %arg2[%c7] : memref<9xf32, #tpu.memory_space<smem>>
    %366 = math.tanh %364 : vector<8x32xf32>
    %367 = vector.broadcast %365 : f32 to vector<8x32xf32>
    %368 = arith.mulf %367, %366 : vector<8x32xf32>
    %369 = arith.addf %346, %368 : vector<8x32xf32>
    %c8_99 = arith.constant 8 : index
    %370 = memref.load %arg2[%c8_99] : memref<9xf32, #tpu.memory_space<smem>>
    %371 = vector.broadcast %370 : f32 to vector<8x32xf32>
    %372 = arith.addf %369, %371 : vector<8x32xf32>
    %373 = math.tanh %372 : vector<8x32xf32>
    %c112 = arith.constant 112 : index
    %c0_100 = arith.constant 0 : index
    %374 = vector.load %arg1[%c112, %c0_100] : memref<152x128xf32, #tpu.memory_space<vmem>>, vector<32x128xf32>
    %c144 = arith.constant 144 : index
    %c0_101 = arith.constant 0 : index
    %375 = vector.load %arg1[%c144, %c0_101] : memref<152x128xf32, #tpu.memory_space<vmem>>, vector<1x128xf32>
    %cst_102 = arith.constant dense<0.000000e+00> : vector<8x128xf32>
    %376 = tpu.matmul %373, %374, %cst_102 {dimension_numbers = #tpu.dot_dimension_numbers<[1], [0], [0], [1], [0, 0, 1, 1], [], []>} : vector<8x32xf32>, vector<32x128xf32>, vector<8x128xf32> -> vector<8x128xf32>
    %377 = vector.broadcast %375 : vector<1x128xf32> to vector<8x128xf32>
    %378 = arith.addf %376, %377 : vector<8x128xf32>
    %379 = math.tanh %378 : vector<8x128xf32>
    %c0_103 = arith.constant 0 : index
    %c0_104 = arith.constant 0 : index
    %380 = vector.load %arg3[%c0_103, %c0_104] : memref<8x128xf32, #tpu.memory_space<vmem>>, vector<8x128xf32>
    tpu.vector_store %arg3[%c0_103, %c0_104], %379 {strides = array<i32>} : memref<8x128xf32, #tpu.memory_space<vmem>>, vector<8x128xf32>,
    return
  }
}

</mosaic_0001>

<llo_original>
// kernel: tpu_custom_call.1
$region0: #{tpu_custom_call.1}
  #allocation0 [shape = 'u32[]', space=smem, size = 0x4, offset = 0x4, fixed_abs, tag = 'smem constant byte address 0x4 - core index']
  #allocation1 [shape = 'u32[72,128]{1,0:T(1,128)}', space=vmem, size = 0x9000, scoped, tag = 'internal scratch']
  #allocation2 [shape = 'f32[64,128]{1,0:T(8,128)}', space=vmem, size = 0x8000, scoped, tag = 'scratch operand']
  #allocation3 [shape = 'f32[64,128]{1,0:T(8,128)}', space=vmem, size = 0x8000, scoped, tag = 'scratch operand']
  %s0 = inlined_call_operand.vmem [shape: f32[64,4], index: 0, kind: input, shape index: {}]
  %s1 = inlined_call_operand.hbm [shape: f32[152,128], index: 1, kind: input, shape index: {}]
  %s2 = inlined_call_operand.vmem [shape: f32[9], index: 2, kind: input, shape index: {}]
  %s3 = inlined_call_operand.hbm [shape: f32[8,128], index: 3, kind: output, shape index: {}]
  %s4 = sld [smem:[#allocation0]]
  $region30: #{tpu_custom_call.1} parent=0
    _
  %s6 = ssub.s32 1, %s4
  %s7 = scalar_select 0, %s6, %s4
  $region1: #{tpu_custom_call.1} parent=0
    #allocation4 [shape = 'u8[77824]{0}', space=vmem, size = 0x13000, scoped, tag = 'input window, operand 1, single buffered']
    #allocation5 [shape = 's32[1]{0}', space=sflag, size = 0x4, scoped, tag = 'scoped memory for tpu_custom_call.1']
    #allocation6 [shape = 's32[1]{0}', space=sflag, size = 0x4, scoped, tag = 'scoped memory for tpu_custom_call.1']
    #allocation7 [shape = 's32[1]{0}', space=sflag, size = 0x4, scoped, tag = 'scoped memory for tpu_custom_call.1']
    #allocation8 [shape = 'u8[512]{0}', space=smem, size = 0x200, scoped, tag = 'input window, operand 2, single buffered']
    #allocation9 [shape = 'u8[4096]{0}', space=vmem, size = 0x1000, scoped, tag = 'output window, operand 0, single buffered']
    %8 = vsyncpa [#allocation5], 0
    %9 = vsyncpa [#allocation7], 0
    %10 = vsyncpa [#allocation6], 0
    // Predicated region
    $region2: #{tpu_custom_call.1} parent=1 // pred_check
      _
    $region3: #{tpu_custom_call.1} parent=1 // pred_check_branch
      %12 = sbr.rel (0) target = $region5
    $region4: #{tpu_custom_call.1} parent=1 // pred_region
      _
    $region5: #{tpu_custom_call.1} parent=1 // pred_fallthru
      _
    // Predicated region
    $region6: #{tpu_custom_call.1} parent=1 // pred_check
      _
    $region7: #{tpu_custom_call.1} parent=1 // pred_check_branch
      %14 = sbr.rel (0) target = $region9
    $region8: #{tpu_custom_call.1} parent=1 // pred_region
      %16 = vsyncadd [#allocation5], 0
      %s17 = sshll.u32 %s1, 4
      %s18 = int_to_ptr.hbm [resolvable:$true] %s17
      %s19 = sshll.u32 [#allocation4], 4
      %s20 = int_to_ptr.vmem [resolvable:$true] %s19
      %25 = dma.hbm_to_vmem [thread:$0]  %s18, 2432, %s20, [#allocation5], 128, 128, 8
    $region9: #{tpu_custom_call.1} parent=1 // pred_fallthru
      _
    // Predicated region
    $region10: #{tpu_custom_call.1} parent=1 // pred_check
      _
    $region11: #{tpu_custom_call.1} parent=1 // pred_check_branch
      %27 = sbr.rel (0) target = $region13
    $region12: #{tpu_custom_call.1} parent=1 // pred_region
      %29 = vsyncadd [#allocation7], 0
      %s31 = sshll.u32 %s2, 4
      %s32 = int_to_ptr.vmem [resolvable:$true] %s31
      %34 = dma.vmem_to_smem %s32, 16, [#allocation8], [#allocation7]
    $region13: #{tpu_custom_call.1} parent=1 // pred_fallthru
      _
    // Predicated region
    $region14: #{tpu_custom_call.1} parent=1 // pred_check
      _
    $region15: #{tpu_custom_call.1} parent=1 // pred_check_branch
      %36 = sbr.rel (0) target = $region17
    $region16: #{tpu_custom_call.1} parent=1 // pred_region
      %38 = dma.done [#allocation5], 2432
    $region17: #{tpu_custom_call.1} parent=1 // pred_fallthru
      _
    // Predicated region
    $region18: #{tpu_custom_call.1} parent=1 // pred_check
      _
    $region19: #{tpu_custom_call.1} parent=1 // pred_check_branch
      %40 = sbr.rel (0) target = $region21
    $region20: #{tpu_custom_call.1} parent=1 // pred_region
      %42 = dma.done [#allocation7], 16
    $region21: #{tpu_custom_call.1} parent=1 // pred_fallthru
      _
    %43 = sfence
    %v44 = vld [vmem:[#allocation4] sm:$0xf]
    %v45 = vld [vmem:[#allocation4 + $0x68] sm:$0x1]
    %v46 = vld [vmem:[%s0] sm:$0xff]
    %v47 = vld [vmem:[%s0 + $0x8] sm:$0xff]
    %v48 = vld [vmem:[%s0 + $0x10] sm:$0xff]
    %v49 = vld [vmem:[%s0 + $0x18] sm:$0xff]
    %v50 = vld [vmem:[%s0 + $0x20] sm:$0xff]
    %v51 = vld [vmem:[%s0 + $0x28] sm:$0xff]
    %v52 = vld [vmem:[%s0 + $0x30] sm:$0xff]
    %v53 = vld [vmem:[%s0 + $0x38] sm:$0xff]
    %v54 = vperm.slane %v45, 0
    %vm55 = vcmask 31744
    %v57 = vsel %vm55, %v46, 0
    %v60 = vsel %vm55, %v47, 0
    %v63 = vsel %vm55, %v48, 0
    %v66 = vsel %vm55, %v49, 0
    %v69 = vsel %vm55, %v50, 0
    %v72 = vsel %vm55, %v51, 0
    %v75 = vsel %vm55, %v52, 0
    %v78 = vsel %vm55, %v53, 0
    %vm80 = vcmask 1043456
    %v82 = vsel %vm80, %v44, 0
    %84 = vmatpush.msra.mxu0 0.0
    %85 = vmatpush.msra.mxu0 0.0
    %86 = vmatpush.msra.mxu0 0.0
    %87 = vmatpush.msra.mxu0 0.0
    %88 = vmatpush.msra.mxu0 0.0
    %89 = vmatpush.msra.mxu0 0.0
    %90 = vmatpush.msra.mxu0 0.0
    %91 = vmatpush.msra.mxu0 0.0
    %92 = vmatpush.msra.mxu0 0.0
    %93 = vmatpush.msra.mxu0 0.0
    %94 = vmatpush.msra.mxu0 0.0
    %95 = vmatpush.msra.mxu0 0.0
    %96 = vmatpush.msra.mxu0 0.0
    %97 = vmatpush.msra.mxu0 0.0
    %98 = vmatpush.msra.mxu0 0.0
    %99 = vmatpush.msra.mxu0 %v82
    %100 = vmatmul.f32.gmra.mxu0 %v57
    %v101 = vpop.f32.mrf.mxu0
    %v102 = vadd.f32 %v54, %v101
    %103 = vmatmul.f32.gmra.mxu0 %v60
    %v104 = vpop.f32.mrf.mxu0
    %v105 = vadd.f32 %v54, %v104
    %106 = vmatmul.f32.gmra.mxu0 %v63
    %v107 = vpop.f32.mrf.mxu0
    %v108 = vadd.f32 %v54, %v107
    %109 = vmatmul.f32.gmra.mxu0 %v66
    %v110 = vpop.f32.mrf.mxu0
    %v111 = vadd.f32 %v54, %v110
    %112 = vmatmul.f32.gmra.mxu0 %v69
    %v113 = vpop.f32.mrf.mxu0
    %v114 = vadd.f32 %v54, %v113
    %115 = vmatmul.f32.gmra.mxu0 %v72
    %v116 = vpop.f32.mrf.mxu0
    %v117 = vadd.f32 %v54, %v116
    %118 = vmatmul.f32.gmra.mxu0 %v75
    %v119 = vpop.f32.mrf.mxu0
    %v120 = vadd.f32 %v54, %v119
    %121 = vmatmul.f32.gmra.mxu0 %v78
    %v122 = vpop.f32.mrf.mxu0
    %v123 = vadd.f32 %v54, %v122
    %124 = vdwg.mxu0
    %125 = vst [vmem:[#allocation2] sm:$0xff] %v102
    %126 = vst [vmem:[#allocation2 + $0x8] sm:$0xff] %v105
    %127 = vst [vmem:[#allocation2 + $0x10] sm:$0xff] %v108
    %128 = vst [vmem:[#allocation2 + $0x18] sm:$0xff] %v111
    %129 = vst [vmem:[#allocation2 + $0x20] sm:$0xff] %v114
    %130 = vst [vmem:[#allocation2 + $0x28] sm:$0xff] %v117
    %131 = vst [vmem:[#allocation2 + $0x30] sm:$0xff] %v120
    %132 = vst [vmem:[#allocation2 + $0x38] sm:$0xff] %v123
    %v133 = vld [vmem:[#allocation4 + $0x28] sm:$0xff]
    %v134 = vld [vmem:[#allocation4 + $0x30] sm:$0xff]
    %v135 = vld [vmem:[#allocation4 + $0x38] sm:$0xff]
    %v136 = vld [vmem:[#allocation4 + $0x40] sm:$0xff]
    %v137 = vld [vmem:[#allocation4 + $0x8] sm:$0xff]
    %v138 = vld [vmem:[#allocation4 + $0x10] sm:$0xff]
    %v139 = vld [vmem:[#allocation4 + $0x18] sm:$0xff]
    %v140 = vld [vmem:[#allocation4 + $0x20] sm:$0xff]
    %v141 = vld [vmem:[#allocation4 + $0x69] sm:$0x1]
    %v142 = vperm.slane %v141, 0
    %v143 = vld [vmem:[#allocation2] sm:$0xff]
    %vm144 = vcmask 261120
    %v146 = vsel %vm144, 0.0, 0
    %148 = vmatpush.msra.mxu0 0.0
    %149 = vmatpush.msra.mxu0 0.0
    %150 = vmatpush.msra.mxu0 0.0
    %151 = vmatpush.msra.mxu0 0.0
    %152 = vmatpush.msra.mxu0 0.0
    %153 = vmatpush.msra.mxu0 0.0
    %154 = vmatpush.msra.mxu0 0.0
    %155 = vmatpush.msra.mxu0 0.0
    %156 = vmatpush.msra.mxu0 0.0
    %157 = vmatpush.msra.mxu0 0.0
    %158 = vmatpush.msra.mxu0 0.0
    %159 = vmatpush.msra.mxu0 0.0
    %160 = vmatpush.msra.mxu0 %v136
    %161 = vmatpush.msra.mxu0 %v135
    %162 = vmatpush.msra.mxu0 %v134
    %163 = vmatpush.msra.mxu0 %v133
    %164 = vmatmul.f32.gmra.mxu0 %v146
    %v165 = vpop.f32.mrf.mxu0
    %v166 = vadd.f32 0.0, %v165
    %167 = vdwg.mxu0
    %v168 = vadd.f32 %v143, %v166
    %v169 = vtanh.pop %v168
    %v170 = vxor.u32 %v168, 2147483648
    %v171 = vmul.f32 %v170, 1.442695
    %v172 = vpow.pop %v171
    %v173 = vadd.f32 %v172, 1.0
    %v174 = vrcp.pop %v173
    %v175 = vmul.f32 %v173, %v174
    %v176 = vsub.f32 1.0, %v175
    %v177 = vmul.f32 %v174, %v176
    %v178 = vadd.f32 %v174, %v177
    %vm179 = vweird.f32 %v173
    %vm180 = vweird.f32 %v174
    %vm181 = vmor %vm179, %vm180
    %v182 = vsel %vm181, %v174, %v178
    %v183 = vand.u32 2147483647, %v173
    %vm184 = vcmp.eq.f32.partialorder %v183, 8.507059e+37
    %v185 = vand.u32 %v173, 2147483648
    %v186 = vor.u32 1.1754944e-38, %v185
    %v187 = vsel %vm184, %v186, %v182
    %v188 = vmul.f32 1.0, %v187
    %v189 = vmul.f32 %v188, 0.0
    %191 = vrot.lane.b32.xlu0 %v169, 32
    %v192 = vpop.permute.xlu0 %191
    %v194 = vmul.f32 %v188, %v192
    %196 = vrot.lane.b32.xlu0 %v194, 32
    %v197 = vpop.permute.xlu0 %196
    %v199 = vadd.f32 %v189, %v197
    %v200 = vtanh.pop %v199
    %202 = vrot.lane.b32.xlu0 %v200, 32
    %v203 = vpop.permute.xlu0 %202
    %v205 = vmul.f32 %v188, %v203
    %207 = vrot.lane.b32.xlu0 %v205, 32
    %v208 = vpop.permute.xlu0 %207
    %v209 = vsel %vm144, %v208, 0
    %211 = vmatpush.msra.mxu0 0.0
    %212 = vmatpush.msra.mxu0 0.0
    %213 = vmatpush.msra.mxu0 0.0
    %214 = vmatpush.msra.mxu0 0.0
    %215 = vmatpush.msra.mxu0 0.0
    %216 = vmatpush.msra.mxu0 0.0
    %217 = vmatpush.msra.mxu0 0.0
    %218 = vmatpush.msra.mxu0 0.0
    %219 = vmatpush.msra.mxu0 0.0
    %220 = vmatpush.msra.mxu0 0.0
    %221 = vmatpush.msra.mxu0 0.0
    %222 = vmatpush.msra.mxu0 0.0
    %223 = vmatpush.msra.mxu0 %v140
    %224 = vmatpush.msra.mxu0 %v139
    %225 = vmatpush.msra.mxu0 %v138
    %226 = vmatpush.msra.mxu0 %v137
    %227 = vmatmul.f32.gmra.mxu0 %v209
    %v228 = vpop.f32.mrf.mxu0
    %v229 = vadd.f32 %v142, %v228
    %230 = vdwg.mxu0
    %231 = vst [vmem:[#allocation3] sm:$0xff] %v229
    %v232 = vld [vmem:[#allocation2 + $0x8] sm:$0xff]
    %233 = vmatpush.msra.mxu0 0.0
    %234 = vmatpush.msra.mxu0 0.0
    %235 = vmatpush.msra.mxu0 0.0
    %236 = vmatpush.msra.mxu0 0.0
    %237 = vmatpush.msra.mxu0 0.0
    %238 = vmatpush.msra.mxu0 0.0
    %239 = vmatpush.msra.mxu0 0.0
    %240 = vmatpush.msra.mxu0 0.0
    %241 = vmatpush.msra.mxu0 0.0
    %242 = vmatpush.msra.mxu0 0.0
    %243 = vmatpush.msra.mxu0 0.0
    %244 = vmatpush.msra.mxu0 0.0
    %245 = vmatpush.msra.mxu0 %v136
    %246 = vmatpush.msra.mxu0 %v135
    %247 = vmatpush.msra.mxu0 %v134
    %248 = vmatpush.msra.mxu0 %v133
    %249 = vmatmul.f32.gmra.mxu0 %v209
    %v250 = vpop.f32.mrf.mxu0
    %v251 = vadd.f32 0.0, %v250
    %252 = vdwg.mxu0
    %v253 = vadd.f32 %v232, %v251
    %v254 = vtanh.pop %v253
    %v255 = vxor.u32 %v253, 2147483648
    %v256 = vmul.f32 %v255, 1.442695
    %v257 = vpow.pop %v256
    %v258 = vadd.f32 %v257, 1.0
    %v259 = vrcp.pop %v258
    %v260 = vmul.f32 %v258, %v259
    %v261 = vsub.f32 1.0, %v260
    %v262 = vmul.f32 %v259, %v261
    %v263 = vadd.f32 %v259, %v262
    %vm264 = vweird.f32 %v258
    %vm265 = vweird.f32 %v259
    %vm266 = vmor %vm264, %vm265
    %v267 = vsel %vm266, %v259, %v263
    %v268 = vand.u32 2147483647, %v258
    %vm269 = vcmp.eq.f32.partialorder %v268, 8.507059e+37
    %v270 = vand.u32 %v258, 2147483648
    %v271 = vor.u32 1.1754944e-38, %v270
    %v272 = vsel %vm269, %v271, %v267
    %v273 = vmul.f32 1.0, %v272
    %v274 = vmul.f32 %v273, %v199
    %276 = vrot.lane.b32.xlu0 %v254, 32
    %v277 = vpop.permute.xlu0 %276
    %v279 = vmul.f32 %v273, %v277
    %281 = vrot.lane.b32.xlu0 %v279, 32
    %v282 = vpop.permute.xlu0 %281
    %v284 = vadd.f32 %v274, %v282
    %v285 = vtanh.pop %v284
    %287 = vrot.lane.b32.xlu0 %v285, 32
    %v288 = vpop.permute.xlu0 %287
    %v290 = vmul.f32 %v273, %v288
    %292 = vrot.lane.b32.xlu0 %v290, 32
    %v293 = vpop.permute.xlu0 %292
    %v294 = vsel %vm144, %v293, 0
    %296 = vmatpush.msra.mxu0 0.0
    %297 = vmatpush.msra.mxu0 0.0
    %298 = vmatpush.msra.mxu0 0.0
    %299 = vmatpush.msra.mxu0 0.0
    %300 = vmatpush.msra.mxu0 0.0
    %301 = vmatpush.msra.mxu0 0.0
    %302 = vmatpush.msra.mxu0 0.0
    %303 = vmatpush.msra.mxu0 0.0
    %304 = vmatpush.msra.mxu0 0.0
    %305 = vmatpush.msra.mxu0 0.0
    %306 = vmatpush.msra.mxu0 0.0
    %307 = vmatpush.msra.mxu0 0.0
    %308 = vmatpush.msra.mxu0 %v140
    %309 = vmatpush.msra.mxu0 %v139
    %310 = vmatpush.msra.mxu0 %v138
    %311 = vmatpush.msra.mxu0 %v137
    %312 = vmatmul.f32.gmra.mxu0 %v294
    %v313 = vpop.f32.mrf.mxu0
    %v314 = vadd.f32 %v142, %v313
    %315 = vdwg.mxu0
    %316 = vst [vmem:[#allocation3 + $0x8] sm:$0xff] %v314
    %v317 = vld [vmem:[#allocation2 + $0x10] sm:$0xff]
    %318 = vmatpush.msra.mxu0 0.0
    %319 = vmatpush.msra.mxu0 0.0
    %320 = vmatpush.msra.mxu0 0.0
    %321 = vmatpush.msra.mxu0 0.0
    %322 = vmatpush.msra.mxu0 0.0
    %323 = vmatpush.msra.mxu0 0.0
    %324 = vmatpush.msra.mxu0 0.0
    %325 = vmatpush.msra.mxu0 0.0
    %326 = vmatpush.msra.mxu0 0.0
    %327 = vmatpush.msra.mxu0 0.0
    %328 = vmatpush.msra.mxu0 0.0
    %329 = vmatpush.msra.mxu0 0.0
    %330 = vmatpush.msra.mxu0 %v136
    %331 = vmatpush.msra.mxu0 %v135
    %332 = vmatpush.msra.mxu0 %v134
    %333 = vmatpush.msra.mxu0 %v133
    %334 = vmatmul.f32.gmra.mxu0 %v294
    %v335 = vpop.f32.mrf.mxu0
    %v336 = vadd.f32 0.0, %v335
    %337 = vdwg.mxu0
    %v338 = vadd.f32 %v317, %v336
    %v339 = vtanh.pop %v338
    %v340 = vxor.u32 %v338, 2147483648
    %v341 = vmul.f32 %v340, 1.442695
    %v342 = vpow.pop %v341
    %v343 = vadd.f32 %v342, 1.0
    %v344 = vrcp.pop %v343
    %v345 = vmul.f32 %v343, %v344
    %v346 = vsub.f32 1.0, %v345
    %v347 = vmul.f32 %v344, %v346
    %v348 = vadd.f32 %v344, %v347
    %vm349 = vweird.f32 %v343
    %vm350 = vweird.f32 %v344
    %vm351 = vmor %vm349, %vm350
    %v352 = vsel %vm351, %v344, %v348
    %v353 = vand.u32 2147483647, %v343
    %vm354 = vcmp.eq.f32.partialorder %v353, 8.507059e+37
    %v355 = vand.u32 %v343, 2147483648
    %v356 = vor.u32 1.1754944e-38, %v355
    %v357 = vsel %vm354, %v356, %v352
    %v358 = vmul.f32 1.0, %v357
    %v359 = vmul.f32 %v358, %v284
    %361 = vrot.lane.b32.xlu0 %v339, 32
    %v362 = vpop.permute.xlu0 %361
    %v364 = vmul.f32 %v358, %v362
    %366 = vrot.lane.b32.xlu0 %v364, 32
    %v367 = vpop.permute.xlu0 %366
    %v369 = vadd.f32 %v359, %v367
    %v370 = vtanh.pop %v369
    %372 = vrot.lane.b32.xlu0 %v370, 32
    %v373 = vpop.permute.xlu0 %372
    %v375 = vmul.f32 %v358, %v373
    %377 = vrot.lane.b32.xlu0 %v375, 32
    %v378 = vpop.permute.xlu0 %377
    %v379 = vsel %vm144, %v378, 0
    %381 = vmatpush.msra.mxu0 0.0
    %382 = vmatpush.msra.mxu0 0.0
    %383 = vmatpush.msra.mxu0 0.0
    %384 = vmatpush.msra.mxu0 0.0
    %385 = vmatpush.msra.mxu0 0.0
    %386 = vmatpush.msra.mxu0 0.0
    %387 = vmatpush.msra.mxu0 0.0
    %388 = vmatpush.msra.mxu0 0.0
    %389 = vmatpush.msra.mxu0 0.0
    %390 = vmatpush.msra.mxu0 0.0
    %391 = vmatpush.msra.mxu0 0.0
    %392 = vmatpush.msra.mxu0 0.0
    %393 = vmatpush.msra.mxu0 %v140
    %394 = vmatpush.msra.mxu0 %v139
    %395 = vmatpush.msra.mxu0 %v138
    %396 = vmatpush.msra.mxu0 %v137
    %397 = vmatmul.f32.gmra.mxu0 %v379
    %v398 = vpop.f32.mrf.mxu0
    %v399 = vadd.f32 %v142, %v398
    %400 = vdwg.mxu0
    %401 = vst [vmem:[#allocation3 + $0x10] sm:$0xff] %v399
    %v402 = vld [vmem:[#allocation2 + $0x18] sm:$0xff]
    %403 = vmatpush.msra.mxu0 0.0
    %404 = vmatpush.msra.mxu0 0.0
    %405 = vmatpush.msra.mxu0 0.0
    %406 = vmatpush.msra.mxu0 0.0
    %407 = vmatpush.msra.mxu0 0.0
    %408 = vmatpush.msra.mxu0 0.0
    %409 = vmatpush.msra.mxu0 0.0
    %410 = vmatpush.msra.mxu0 0.0
    %411 = vmatpush.msra.mxu0 0.0
    %412 = vmatpush.msra.mxu0 0.0
    %413 = vmatpush.msra.mxu0 0.0
    %414 = vmatpush.msra.mxu0 0.0
    %415 = vmatpush.msra.mxu0 %v136
    %416 = vmatpush.msra.mxu0 %v135
    %417 = vmatpush.msra.mxu0 %v134
    %418 = vmatpush.msra.mxu0 %v133
    %419 = vmatmul.f32.gmra.mxu0 %v379
    %v420 = vpop.f32.mrf.mxu0
    %v421 = vadd.f32 0.0, %v420
    %422 = vdwg.mxu0
    %v423 = vadd.f32 %v402, %v421
    %v424 = vtanh.pop %v423
    %v425 = vxor.u32 %v423, 2147483648
    %v426 = vmul.f32 %v425, 1.442695
    %v427 = vpow.pop %v426
    %v428 = vadd.f32 %v427, 1.0
    %v429 = vrcp.pop %v428
    %v430 = vmul.f32 %v428, %v429
    %v431 = vsub.f32 1.0, %v430
    %v432 = vmul.f32 %v429, %v431
    %v433 = vadd.f32 %v429, %v432
    %vm434 = vweird.f32 %v428
    %vm435 = vweird.f32 %v429
    %vm436 = vmor %vm434, %vm435
    %v437 = vsel %vm436, %v429, %v433
    %v438 = vand.u32 2147483647, %v428
    %vm439 = vcmp.eq.f32.partialorder %v438, 8.507059e+37
    %v440 = vand.u32 %v428, 2147483648
    %v441 = vor.u32 1.1754944e-38, %v440
    %v442 = vsel %vm439, %v441, %v437
    %v443 = vmul.f32 1.0, %v442
    %v444 = vmul.f32 %v443, %v369
    %446 = vrot.lane.b32.xlu0 %v424, 32
    %v447 = vpop.permute.xlu0 %446
    %v449 = vmul.f32 %v443, %v447
    %451 = vrot.lane.b32.xlu0 %v449, 32
    %v452 = vpop.permute.xlu0 %451
    %v454 = vadd.f32 %v444, %v452
    %v455 = vtanh.pop %v454
    %457 = vrot.lane.b32.xlu0 %v455, 32
    %v458 = vpop.permute.xlu0 %457
    %v460 = vmul.f32 %v443, %v458
    %462 = vrot.lane.b32.xlu0 %v460, 32
    %v463 = vpop.permute.xlu0 %462
    %v464 = vsel %vm144, %v463, 0
    %466 = vmatpush.msra.mxu0 0.0
    %467 = vmatpush.msra.mxu0 0.0
    %468 = vmatpush.msra.mxu0 0.0
    %469 = vmatpush.msra.mxu0 0.0
    %470 = vmatpush.msra.mxu0 0.0
    %471 = vmatpush.msra.mxu0 0.0
    %472 = vmatpush.msra.mxu0 0.0
    %473 = vmatpush.msra.mxu0 0.0
    %474 = vmatpush.msra.mxu0 0.0
    %475 = vmatpush.msra.mxu0 0.0
    %476 = vmatpush.msra.mxu0 0.0
    %477 = vmatpush.msra.mxu0 0.0
    %478 = vmatpush.msra.mxu0 %v140
    %479 = vmatpush.msra.mxu0 %v139
    %480 = vmatpush.msra.mxu0 %v138
    %481 = vmatpush.msra.mxu0 %v137
    %482 = vmatmul.f32.gmra.mxu0 %v464
    %v483 = vpop.f32.mrf.mxu0
    %v484 = vadd.f32 %v142, %v483
    %485 = vdwg.mxu0
    %486 = vst [vmem:[#allocation3 + $0x18] sm:$0xff] %v484
    %v487 = vld [vmem:[#allocation2 + $0x20] sm:$0xff]
    %488 = vmatpush.msra.mxu0 0.0
    %489 = vmatpush.msra.mxu0 0.0
    %490 = vmatpush.msra.mxu0 0.0
    %491 = vmatpush.msra.mxu0 0.0
    %492 = vmatpush.msra.mxu0 0.0
    %493 = vmatpush.msra.mxu0 0.0
    %494 = vmatpush.msra.mxu0 0.0
    %495 = vmatpush.msra.mxu0 0.0
    %496 = vmatpush.msra.mxu0 0.0
    %497 = vmatpush.msra.mxu0 0.0
    %498 = vmatpush.msra.mxu0 0.0
    %499 = vmatpush.msra.mxu0 0.0
    %500 = vmatpush.msra.mxu0 %v136
    %501 = vmatpush.msra.mxu0 %v135
    %502 = vmatpush.msra.mxu0 %v134
    %503 = vmatpush.msra.mxu0 %v133
    %504 = vmatmul.f32.gmra.mxu0 %v464
    %v505 = vpop.f32.mrf.mxu0
    %v506 = vadd.f32 0.0, %v505
    %507 = vdwg.mxu0
    %v508 = vadd.f32 %v487, %v506
    %v509 = vtanh.pop %v508
    %v510 = vxor.u32 %v508, 2147483648
    %v511 = vmul.f32 %v510, 1.442695
    %v512 = vpow.pop %v511
    %v513 = vadd.f32 %v512, 1.0
    %v514 = vrcp.pop %v513
    %v515 = vmul.f32 %v513, %v514
    %v516 = vsub.f32 1.0, %v515
    %v517 = vmul.f32 %v514, %v516
    %v518 = vadd.f32 %v514, %v517
    %vm519 = vweird.f32 %v513
    %vm520 = vweird.f32 %v514
    %vm521 = vmor %vm519, %vm520
    %v522 = vsel %vm521, %v514, %v518
    %v523 = vand.u32 2147483647, %v513
    %vm524 = vcmp.eq.f32.partialorder %v523, 8.507059e+37
    %v525 = vand.u32 %v513, 2147483648
    %v526 = vor.u32 1.1754944e-38, %v525
    %v527 = vsel %vm524, %v526, %v522
    %v528 = vmul.f32 1.0, %v527
    %v529 = vmul.f32 %v528, %v454
    %531 = vrot.lane.b32.xlu0 %v509, 32
    %v532 = vpop.permute.xlu0 %531
    %v534 = vmul.f32 %v528, %v532
    %536 = vrot.lane.b32.xlu0 %v534, 32
    %v537 = vpop.permute.xlu0 %536
    %v539 = vadd.f32 %v529, %v537
    %v540 = vtanh.pop %v539
    %542 = vrot.lane.b32.xlu0 %v540, 32
    %v543 = vpop.permute.xlu0 %542
    %v545 = vmul.f32 %v528, %v543
    %547 = vrot.lane.b32.xlu0 %v545, 32
    %v548 = vpop.permute.xlu0 %547
    %v549 = vsel %vm144, %v548, 0
    %551 = vmatpush.msra.mxu0 0.0
    %552 = vmatpush.msra.mxu0 0.0
    %553 = vmatpush.msra.mxu0 0.0
    %554 = vmatpush.msra.mxu0 0.0
    %555 = vmatpush.msra.mxu0 0.0
    %556 = vmatpush.msra.mxu0 0.0
    %557 = vmatpush.msra.mxu0 0.0
    %558 = vmatpush.msra.mxu0 0.0
    %559 = vmatpush.msra.mxu0 0.0
    %560 = vmatpush.msra.mxu0 0.0
    %561 = vmatpush.msra.mxu0 0.0
    %562 = vmatpush.msra.mxu0 0.0
    %563 = vmatpush.msra.mxu0 %v140
    %564 = vmatpush.msra.mxu0 %v139
    %565 = vmatpush.msra.mxu0 %v138
    %566 = vmatpush.msra.mxu0 %v137
    %567 = vmatmul.f32.gmra.mxu0 %v549
    %v568 = vpop.f32.mrf.mxu0
    %v569 = vadd.f32 %v142, %v568
    %570 = vdwg.mxu0
    %571 = vst [vmem:[#allocation3 + $0x20] sm:$0xff] %v569
    %v572 = vld [vmem:[#allocation2 + $0x28] sm:$0xff]
    %573 = vmatpush.msra.mxu0 0.0
    %574 = vmatpush.msra.mxu0 0.0
    %575 = vmatpush.msra.mxu0 0.0
    %576 = vmatpush.msra.mxu0 0.0
    %577 = vmatpush.msra.mxu0 0.0
    %578 = vmatpush.msra.mxu0 0.0
    %579 = vmatpush.msra.mxu0 0.0
    %580 = vmatpush.msra.mxu0 0.0
    %581 = vmatpush.msra.mxu0 0.0
    %582 = vmatpush.msra.mxu0 0.0
    %583 = vmatpush.msra.mxu0 0.0
    %584 = vmatpush.msra.mxu0 0.0
    %585 = vmatpush.msra.mxu0 %v136
    %586 = vmatpush.msra.mxu0 %v135
    %587 = vmatpush.msra.mxu0 %v134
    %588 = vmatpush.msra.mxu0 %v133
    %589 = vmatmul.f32.gmra.mxu0 %v549
    %v590 = vpop.f32.mrf.mxu0
    %v591 = vadd.f32 0.0, %v590
    %592 = vdwg.mxu0
    %v593 = vadd.f32 %v572, %v591
    %v594 = vtanh.pop %v593
    %v595 = vxor.u32 %v593, 2147483648
    %v596 = vmul.f32 %v595, 1.442695
    %v597 = vpow.pop %v596
    %v598 = vadd.f32 %v597, 1.0
    %v599 = vrcp.pop %v598
    %v600 = vmul.f32 %v598, %v599
    %v601 = vsub.f32 1.0, %v600
    %v602 = vmul.f32 %v599, %v601
    %v603 = vadd.f32 %v599, %v602
    %vm604 = vweird.f32 %v598
    %vm605 = vweird.f32 %v599
    %vm606 = vmor %vm604, %vm605
    %v607 = vsel %vm606, %v599, %v603
    %v608 = vand.u32 2147483647, %v598
    %vm609 = vcmp.eq.f32.partialorder %v608, 8.507059e+37
    %v610 = vand.u32 %v598, 2147483648
    %v611 = vor.u32 1.1754944e-38, %v610
    %v612 = vsel %vm609, %v611, %v607
    %v613 = vmul.f32 1.0, %v612
    %v614 = vmul.f32 %v613, %v539
    %616 = vrot.lane.b32.xlu0 %v594, 32
    %v617 = vpop.permute.xlu0 %616
    %v619 = vmul.f32 %v613, %v617
    %621 = vrot.lane.b32.xlu0 %v619, 32
    %v622 = vpop.permute.xlu0 %621
    %v624 = vadd.f32 %v614, %v622
    %v625 = vtanh.pop %v624
    %627 = vrot.lane.b32.xlu0 %v625, 32
    %v628 = vpop.permute.xlu0 %627
    %v630 = vmul.f32 %v613, %v628
    %632 = vrot.lane.b32.xlu0 %v630, 32
    %v633 = vpop.permute.xlu0 %632
    %v634 = vsel %vm144, %v633, 0
    %636 = vmatpush.msra.mxu0 0.0
    %637 = vmatpush.msra.mxu0 0.0
    %638 = vmatpush.msra.mxu0 0.0
    %639 = vmatpush.msra.mxu0 0.0
    %640 = vmatpush.msra.mxu0 0.0
    %641 = vmatpush.msra.mxu0 0.0
    %642 = vmatpush.msra.mxu0 0.0
    %643 = vmatpush.msra.mxu0 0.0
    %644 = vmatpush.msra.mxu0 0.0
    %645 = vmatpush.msra.mxu0 0.0
    %646 = vmatpush.msra.mxu0 0.0
    %647 = vmatpush.msra.mxu0 0.0
    %648 = vmatpush.msra.mxu0 %v140
    %649 = vmatpush.msra.mxu0 %v139
    %650 = vmatpush.msra.mxu0 %v138
    %651 = vmatpush.msra.mxu0 %v137
    %652 = vmatmul.f32.gmra.mxu0 %v634
    %v653 = vpop.f32.mrf.mxu0
    %v654 = vadd.f32 %v142, %v653
    %655 = vdwg.mxu0
    %656 = vst [vmem:[#allocation3 + $0x28] sm:$0xff] %v654
    %v657 = vld [vmem:[#allocation2 + $0x30] sm:$0xff]
    %658 = vmatpush.msra.mxu0 0.0
    %659 = vmatpush.msra.mxu0 0.0
    %660 = vmatpush.msra.mxu0 0.0
    %661 = vmatpush.msra.mxu0 0.0
    %662 = vmatpush.msra.mxu0 0.0
    %663 = vmatpush.msra.mxu0 0.0
    %664 = vmatpush.msra.mxu0 0.0
    %665 = vmatpush.msra.mxu0 0.0
    %666 = vmatpush.msra.mxu0 0.0
    %667 = vmatpush.msra.mxu0 0.0
    %668 = vmatpush.msra.mxu0 0.0
    %669 = vmatpush.msra.mxu0 0.0
    %670 = vmatpush.msra.mxu0 %v136
    %671 = vmatpush.msra.mxu0 %v135
    %672 = vmatpush.msra.mxu0 %v134
    %673 = vmatpush.msra.mxu0 %v133
    %674 = vmatmul.f32.gmra.mxu0 %v634
    %v675 = vpop.f32.mrf.mxu0
    %v676 = vadd.f32 0.0, %v675
    %677 = vdwg.mxu0
    %v678 = vadd.f32 %v657, %v676
    %v679 = vtanh.pop %v678
    %v680 = vxor.u32 %v678, 2147483648
    %v681 = vmul.f32 %v680, 1.442695
    %v682 = vpow.pop %v681
    %v683 = vadd.f32 %v682, 1.0
    %v684 = vrcp.pop %v683
    %v685 = vmul.f32 %v683, %v684
    %v686 = vsub.f32 1.0, %v685
    %v687 = vmul.f32 %v684, %v686
    %v688 = vadd.f32 %v684, %v687
    %vm689 = vweird.f32 %v683
    %vm690 = vweird.f32 %v684
    %vm691 = vmor %vm689, %vm690
    %v692 = vsel %vm691, %v684, %v688
    %v693 = vand.u32 2147483647, %v683
    %vm694 = vcmp.eq.f32.partialorder %v693, 8.507059e+37
    %v695 = vand.u32 %v683, 2147483648
    %v696 = vor.u32 1.1754944e-38, %v695
    %v697 = vsel %vm694, %v696, %v692
    %v698 = vmul.f32 1.0, %v697
    %v699 = vmul.f32 %v698, %v624
    %701 = vrot.lane.b32.xlu0 %v679, 32
    %v702 = vpop.permute.xlu0 %701
    %v704 = vmul.f32 %v698, %v702
    %706 = vrot.lane.b32.xlu0 %v704, 32
    %v707 = vpop.permute.xlu0 %706
    %v709 = vadd.f32 %v699, %v707
    %v710 = vtanh.pop %v709
    %712 = vrot.lane.b32.xlu0 %v710, 32
    %v713 = vpop.permute.xlu0 %712
    %v715 = vmul.f32 %v698, %v713
    %717 = vrot.lane.b32.xlu0 %v715, 32
    %v718 = vpop.permute.xlu0 %717
    %v719 = vsel %vm144, %v718, 0
    %721 = vmatpush.msra.mxu0 0.0
    %722 = vmatpush.msra.mxu0 0.0
    %723 = vmatpush.msra.mxu0 0.0
    %724 = vmatpush.msra.mxu0 0.0
    %725 = vmatpush.msra.mxu0 0.0
    %726 = vmatpush.msra.mxu0 0.0
    %727 = vmatpush.msra.mxu0 0.0
    %728 = vmatpush.msra.mxu0 0.0
    %729 = vmatpush.msra.mxu0 0.0
    %730 = vmatpush.msra.mxu0 0.0
    %731 = vmatpush.msra.mxu0 0.0
    %732 = vmatpush.msra.mxu0 0.0
    %733 = vmatpush.msra.mxu0 %v140
    %734 = vmatpush.msra.mxu0 %v139
    %735 = vmatpush.msra.mxu0 %v138
    %736 = vmatpush.msra.mxu0 %v137
    %737 = vmatmul.f32.gmra.mxu0 %v719
    %v738 = vpop.f32.mrf.mxu0
    %v739 = vadd.f32 %v142, %v738
    %740 = vdwg.mxu0
    %741 = vst [vmem:[#allocation3 + $0x30] sm:$0xff] %v739
    %v742 = vld [vmem:[#allocation2 + $0x38] sm:$0xff]
    %743 = vmatpush.msra.mxu0 0.0
    %744 = vmatpush.msra.mxu0 0.0
    %745 = vmatpush.msra.mxu0 0.0
    %746 = vmatpush.msra.mxu0 0.0
    %747 = vmatpush.msra.mxu0 0.0
    %748 = vmatpush.msra.mxu0 0.0
    %749 = vmatpush.msra.mxu0 0.0
    %750 = vmatpush.msra.mxu0 0.0
    %751 = vmatpush.msra.mxu0 0.0
    %752 = vmatpush.msra.mxu0 0.0
    %753 = vmatpush.msra.mxu0 0.0
    %754 = vmatpush.msra.mxu0 0.0
    %755 = vmatpush.msra.mxu0 %v136
    %756 = vmatpush.msra.mxu0 %v135
    %757 = vmatpush.msra.mxu0 %v134
    %758 = vmatpush.msra.mxu0 %v133
    %759 = vmatmul.f32.gmra.mxu0 %v719
    %v760 = vpop.f32.mrf.mxu0
    %v761 = vadd.f32 0.0, %v760
    %762 = vdwg.mxu0
    %v763 = vadd.f32 %v742, %v761
    %v764 = vtanh.pop %v763
    %v765 = vxor.u32 %v763, 2147483648
    %v766 = vmul.f32 %v765, 1.442695
    %v767 = vpow.pop %v766
    %v768 = vadd.f32 %v767, 1.0
    %v769 = vrcp.pop %v768
    %v770 = vmul.f32 %v768, %v769
    %v771 = vsub.f32 1.0, %v770
    %v772 = vmul.f32 %v769, %v771
    %v773 = vadd.f32 %v769, %v772
    %vm774 = vweird.f32 %v768
    %vm775 = vweird.f32 %v769
    %vm776 = vmor %vm774, %vm775
    %v777 = vsel %vm776, %v769, %v773
    %v778 = vand.u32 2147483647, %v768
    %vm779 = vcmp.eq.f32.partialorder %v778, 8.507059e+37
    %v780 = vand.u32 %v768, 2147483648
    %v781 = vor.u32 1.1754944e-38, %v780
    %v782 = vsel %vm779, %v781, %v777
    %v783 = vmul.f32 1.0, %v782
    %v784 = vmul.f32 %v783, %v709
    %786 = vrot.lane.b32.xlu0 %v764, 32
    %v787 = vpop.permute.xlu0 %786
    %v789 = vmul.f32 %v783, %v787
    %791 = vrot.lane.b32.xlu0 %v789, 32
    %v792 = vpop.permute.xlu0 %791
    %v794 = vadd.f32 %v784, %v792
    %v795 = vtanh.pop %v794
    %797 = vrot.lane.b32.xlu0 %v795, 32
    %v798 = vpop.permute.xlu0 %797
    %v800 = vmul.f32 %v783, %v798
    %802 = vrot.lane.b32.xlu0 %v800, 32
    %v803 = vpop.permute.xlu0 %802
    %v804 = vsel %vm144, %v803, 0
    %806 = vmatpush.msra.mxu0 0.0
    %807 = vmatpush.msra.mxu0 0.0
    %808 = vmatpush.msra.mxu0 0.0
    %809 = vmatpush.msra.mxu0 0.0
    %810 = vmatpush.msra.mxu0 0.0
    %811 = vmatpush.msra.mxu0 0.0
    %812 = vmatpush.msra.mxu0 0.0
    %813 = vmatpush.msra.mxu0 0.0
    %814 = vmatpush.msra.mxu0 0.0
    %815 = vmatpush.msra.mxu0 0.0
    %816 = vmatpush.msra.mxu0 0.0
    %817 = vmatpush.msra.mxu0 0.0
    %818 = vmatpush.msra.mxu0 %v140
    %819 = vmatpush.msra.mxu0 %v139
    %820 = vmatpush.msra.mxu0 %v138
    %821 = vmatpush.msra.mxu0 %v137
    %822 = vmatmul.f32.gmra.mxu0 %v804
    %v823 = vpop.f32.mrf.mxu0
    %v824 = vadd.f32 %v142, %v823
    %825 = vdwg.mxu0
    %826 = vst [vmem:[#allocation3 + $0x38] sm:$0xff] %v824
    %v827 = vld [vmem:[#allocation4 + $0x48] sm:$0xff]
    %v828 = vld [vmem:[#allocation4 + $0x50] sm:$0xff]
    %v829 = vld [vmem:[#allocation4 + $0x58] sm:$0xff]
    %v830 = vld [vmem:[#allocation4 + $0x60] sm:$0xff]
    %v831 = vld [vmem:[#allocation3] sm:$0xff]
    %832 = vmatpush.msra.mxu0 0.0
    %833 = vmatpush.msra.mxu0 0.0
    %834 = vmatpush.msra.mxu0 0.0
    %835 = vmatpush.msra.mxu0 0.0
    %836 = vmatpush.msra.mxu0 0.0
    %837 = vmatpush.msra.mxu0 0.0
    %838 = vmatpush.msra.mxu0 0.0
    %839 = vmatpush.msra.mxu0 0.0
    %840 = vmatpush.msra.mxu0 0.0
    %841 = vmatpush.msra.mxu0 0.0
    %842 = vmatpush.msra.mxu0 0.0
    %843 = vmatpush.msra.mxu0 0.0
    %844 = vmatpush.msra.mxu0 %v830
    %845 = vmatpush.msra.mxu0 %v829
    %846 = vmatpush.msra.mxu0 %v828
    %847 = vmatpush.msra.mxu0 %v827
    %848 = vmatmul.f32.gmra.mxu0 %v146
    %v849 = vpop.f32.mrf.mxu0
    %v850 = vadd.f32 0.0, %v849
    %851 = vdwg.mxu0
    %v852 = vadd.f32 %v831, %v850
    %v853 = vtanh.pop %v852
    %v854 = vxor.u32 %v852, 2147483648
    %v855 = vmul.f32 %v854, 1.442695
    %v856 = vpow.pop %v855
    %v857 = vadd.f32 %v856, 1.0
    %v858 = vrcp.pop %v857
    %v859 = vmul.f32 %v857, %v858
    %v860 = vsub.f32 1.0, %v859
    %v861 = vmul.f32 %v858, %v860
    %v862 = vadd.f32 %v858, %v861
    %vm863 = vweird.f32 %v857
    %vm864 = vweird.f32 %v858
    %vm865 = vmor %vm863, %vm864
    %v866 = vsel %vm865, %v858, %v862
    %v867 = vand.u32 2147483647, %v857
    %vm868 = vcmp.eq.f32.partialorder %v867, 8.507059e+37
    %v869 = vand.u32 %v857, 2147483648
    %v870 = vor.u32 1.1754944e-38, %v869
    %v871 = vsel %vm868, %v870, %v866
    %v872 = vmul.f32 1.0, %v871
    %v873 = vmul.f32 %v872, 0.0
    %875 = vrot.lane.b32.xlu0 %v853, 32
    %v876 = vpop.permute.xlu0 %875
    %v878 = vmul.f32 %v872, %v876
    %880 = vrot.lane.b32.xlu0 %v878, 32
    %v881 = vpop.permute.xlu0 %880
    %v883 = vadd.f32 %v873, %v881
    %v884 = vtanh.pop %v883
    %886 = vrot.lane.b32.xlu0 %v884, 32
    %v887 = vpop.permute.xlu0 %886
    %v889 = vmul.f32 %v872, %v887
    %s890 = sld [smem:[#allocation8]]
    %v891 = vtanh.pop %v889
    %v892 = vstv %s890
    %v893 = vmul.f32 %v892, %v891
    %v894 = vadd.f32 %v893, 0.0
    %v895 = vld [vmem:[#allocation3 + $0x8] sm:$0xff]
    %897 = vrot.lane.b32.xlu0 %v889, 32
    %v898 = vpop.permute.xlu0 %897
    %v899 = vsel %vm144, %v898, 0
    %901 = vmatpush.msra.mxu0 0.0
    %902 = vmatpush.msra.mxu0 0.0
    %903 = vmatpush.msra.mxu0 0.0
    %904 = vmatpush.msra.mxu0 0.0
    %905 = vmatpush.msra.mxu0 0.0
    %906 = vmatpush.msra.mxu0 0.0
    %907 = vmatpush.msra.mxu0 0.0
    %908 = vmatpush.msra.mxu0 0.0
    %909 = vmatpush.msra.mxu0 0.0
    %910 = vmatpush.msra.mxu0 0.0
    %911 = vmatpush.msra.mxu0 0.0
    %912 = vmatpush.msra.mxu0 0.0
    %913 = vmatpush.msra.mxu0 %v830
    %914 = vmatpush.msra.mxu0 %v829
    %915 = vmatpush.msra.mxu0 %v828
    %916 = vmatpush.msra.mxu0 %v827
    %917 = vmatmul.f32.gmra.mxu0 %v899
    %v918 = vpop.f32.mrf.mxu0
    %v919 = vadd.f32 0.0, %v918
    %920 = vdwg.mxu0
    %v921 = vadd.f32 %v895, %v919
    %v922 = vtanh.pop %v921
    %v923 = vxor.u32 %v921, 2147483648
    %v924 = vmul.f32 %v923, 1.442695
    %v925 = vpow.pop %v924
    %v926 = vadd.f32 %v925, 1.0
    %v927 = vrcp.pop %v926
    %v928 = vmul.f32 %v926, %v927
    %v929 = vsub.f32 1.0, %v928
    %v930 = vmul.f32 %v927, %v929
    %v931 = vadd.f32 %v927, %v930
    %vm932 = vweird.f32 %v926
    %vm933 = vweird.f32 %v927
    %vm934 = vmor %vm932, %vm933
    %v935 = vsel %vm934, %v927, %v931
    %v936 = vand.u32 2147483647, %v926
    %vm937 = vcmp.eq.f32.partialorder %v936, 8.507059e+37
    %v938 = vand.u32 %v926, 2147483648
    %v939 = vor.u32 1.1754944e-38, %v938
    %v940 = vsel %vm937, %v939, %v935
    %v941 = vmul.f32 1.0, %v940
    %v942 = vmul.f32 %v941, %v883
    %944 = vrot.lane.b32.xlu0 %v922, 32
    %v945 = vpop.permute.xlu0 %944
    %v947 = vmul.f32 %v941, %v945
    %949 = vrot.lane.b32.xlu0 %v947, 32
    %v950 = vpop.permute.xlu0 %949
    %v952 = vadd.f32 %v942, %v950
    %v953 = vtanh.pop %v952
    %955 = vrot.lane.b32.xlu0 %v953, 32
    %v956 = vpop.permute.xlu0 %955
    %v958 = vmul.f32 %v941, %v956
    %s959 = sld [smem:[#allocation8 + $0x1]]
    %v960 = vtanh.pop %v958
    %v961 = vstv %s959
    %v962 = vmul.f32 %v961, %v960
    %v963 = vadd.f32 %v894, %v962
    %v964 = vld [vmem:[#allocation3 + $0x10] sm:$0xff]
    %966 = vrot.lane.b32.xlu0 %v958, 32
    %v967 = vpop.permute.xlu0 %966
    %v968 = vsel %vm144, %v967, 0
    %970 = vmatpush.msra.mxu0 0.0
    %971 = vmatpush.msra.mxu0 0.0
    %972 = vmatpush.msra.mxu0 0.0
    %973 = vmatpush.msra.mxu0 0.0
    %974 = vmatpush.msra.mxu0 0.0
    %975 = vmatpush.msra.mxu0 0.0
    %976 = vmatpush.msra.mxu0 0.0
    %977 = vmatpush.msra.mxu0 0.0
    %978 = vmatpush.msra.mxu0 0.0
    %979 = vmatpush.msra.mxu0 0.0
    %980 = vmatpush.msra.mxu0 0.0
    %981 = vmatpush.msra.mxu0 0.0
    %982 = vmatpush.msra.mxu0 %v830
    %983 = vmatpush.msra.mxu0 %v829
    %984 = vmatpush.msra.mxu0 %v828
    %985 = vmatpush.msra.mxu0 %v827
    %986 = vmatmul.f32.gmra.mxu0 %v968
    %v987 = vpop.f32.mrf.mxu0
    %v988 = vadd.f32 0.0, %v987
    %989 = vdwg.mxu0
    %v990 = vadd.f32 %v964, %v988
    %v991 = vtanh.pop %v990
    %v992 = vxor.u32 %v990, 2147483648
    %v993 = vmul.f32 %v992, 1.442695
    %v994 = vpow.pop %v993
    %v995 = vadd.f32 %v994, 1.0
    %v996 = vrcp.pop %v995
    %v997 = vmul.f32 %v995, %v996
    %v998 = vsub.f32 1.0, %v997
    %v999 = vmul.f32 %v996, %v998
    %v1000 = vadd.f32 %v996, %v999
    %vm1001 = vweird.f32 %v995
    %vm1002 = vweird.f32 %v996
    %vm1003 = vmor %vm1001, %vm1002
    %v1004 = vsel %vm1003, %v996, %v1000
    %v1005 = vand.u32 2147483647, %v995
    %vm1006 = vcmp.eq.f32.partialorder %v1005, 8.507059e+37
    %v1007 = vand.u32 %v995, 2147483648
    %v1008 = vor.u32 1.1754944e-38, %v1007
    %v1009 = vsel %vm1006, %v1008, %v1004
    %v1010 = vmul.f32 1.0, %v1009
    %v1011 = vmul.f32 %v1010, %v952
    %1013 = vrot.lane.b32.xlu0 %v991, 32
    %v1014 = vpop.permute.xlu0 %1013
    %v1016 = vmul.f32 %v1010, %v1014
    %1018 = vrot.lane.b32.xlu0 %v1016, 32
    %v1019 = vpop.permute.xlu0 %1018
    %v1021 = vadd.f32 %v1011, %v1019
    %v1022 = vtanh.pop %v1021
    %1024 = vrot.lane.b32.xlu0 %v1022, 32
    %v1025 = vpop.permute.xlu0 %1024
    %v1027 = vmul.f32 %v1010, %v1025
    %s1028 = sld [smem:[#allocation8 + $0x2]]
    %v1029 = vtanh.pop %v1027
    %v1030 = vstv %s1028
    %v1031 = vmul.f32 %v1030, %v1029
    %v1032 = vadd.f32 %v963, %v1031
    %v1033 = vld [vmem:[#allocation3 + $0x18] sm:$0xff]
    %1035 = vrot.lane.b32.xlu0 %v1027, 32
    %v1036 = vpop.permute.xlu0 %1035
    %v1037 = vsel %vm144, %v1036, 0
    %1039 = vmatpush.msra.mxu0 0.0
    %1040 = vmatpush.msra.mxu0 0.0
    %1041 = vmatpush.msra.mxu0 0.0
    %1042 = vmatpush.msra.mxu0 0.0
    %1043 = vmatpush.msra.mxu0 0.0
    %1044 = vmatpush.msra.mxu0 0.0
    %1045 = vmatpush.msra.mxu0 0.0
    %1046 = vmatpush.msra.mxu0 0.0
    %1047 = vmatpush.msra.mxu0 0.0
    %1048 = vmatpush.msra.mxu0 0.0
    %1049 = vmatpush.msra.mxu0 0.0
    %1050 = vmatpush.msra.mxu0 0.0
    %1051 = vmatpush.msra.mxu0 %v830
    %1052 = vmatpush.msra.mxu0 %v829
    %1053 = vmatpush.msra.mxu0 %v828
    %1054 = vmatpush.msra.mxu0 %v827
    %1055 = vmatmul.f32.gmra.mxu0 %v1037
    %v1056 = vpop.f32.mrf.mxu0
    %v1057 = vadd.f32 0.0, %v1056
    %1058 = vdwg.mxu0
    %v1059 = vadd.f32 %v1033, %v1057
    %v1060 = vtanh.pop %v1059
    %v1061 = vxor.u32 %v1059, 2147483648
    %v1062 = vmul.f32 %v1061, 1.442695
    %v1063 = vpow.pop %v1062
    %v1064 = vadd.f32 %v1063, 1.0
    %v1065 = vrcp.pop %v1064
    %v1066 = vmul.f32 %v1064, %v1065
    %v1067 = vsub.f32 1.0, %v1066
    %v1068 = vmul.f32 %v1065, %v1067
    %v1069 = vadd.f32 %v1065, %v1068
    %vm1070 = vweird.f32 %v1064
    %vm1071 = vweird.f32 %v1065
    %vm1072 = vmor %vm1070, %vm1071
    %v1073 = vsel %vm1072, %v1065, %v1069
    %v1074 = vand.u32 2147483647, %v1064
    %vm1075 = vcmp.eq.f32.partialorder %v1074, 8.507059e+37
    %v1076 = vand.u32 %v1064, 2147483648
    %v1077 = vor.u32 1.1754944e-38, %v1076
    %v1078 = vsel %vm1075, %v1077, %v1073
    %v1079 = vmul.f32 1.0, %v1078
    %v1080 = vmul.f32 %v1079, %v1021
    %1082 = vrot.lane.b32.xlu0 %v1060, 32
    %v1083 = vpop.permute.xlu0 %1082
    %v1085 = vmul.f32 %v1079, %v1083
    %1087 = vrot.lane.b32.xlu0 %v1085, 32
    %v1088 = vpop.permute.xlu0 %1087
    %v1090 = vadd.f32 %v1080, %v1088
    %v1091 = vtanh.pop %v1090
    %1093 = vrot.lane.b32.xlu0 %v1091, 32
    %v1094 = vpop.permute.xlu0 %1093
    %v1096 = vmul.f32 %v1079, %v1094
    %s1097 = sld [smem:[#allocation8 + $0x3]]
    %v1098 = vtanh.pop %v1096
    %v1099 = vstv %s1097
    %v1100 = vmul.f32 %v1099, %v1098
    %v1101 = vadd.f32 %v1032, %v1100
    %v1102 = vld [vmem:[#allocation3 + $0x20] sm:$0xff]
    %1104 = vrot.lane.b32.xlu0 %v1096, 32
    %v1105 = vpop.permute.xlu0 %1104
    %v1106 = vsel %vm144, %v1105, 0
    %1108 = vmatpush.msra.mxu0 0.0
    %1109 = vmatpush.msra.mxu0 0.0
    %1110 = vmatpush.msra.mxu0 0.0
    %1111 = vmatpush.msra.mxu0 0.0
    %1112 = vmatpush.msra.mxu0 0.0
    %1113 = vmatpush.msra.mxu0 0.0
    %1114 = vmatpush.msra.mxu0 0.0
    %1115 = vmatpush.msra.mxu0 0.0
    %1116 = vmatpush.msra.mxu0 0.0
    %1117 = vmatpush.msra.mxu0 0.0
    %1118 = vmatpush.msra.mxu0 0.0
    %1119 = vmatpush.msra.mxu0 0.0
    %1120 = vmatpush.msra.mxu0 %v830
    %1121 = vmatpush.msra.mxu0 %v829
    %1122 = vmatpush.msra.mxu0 %v828
    %1123 = vmatpush.msra.mxu0 %v827
    %1124 = vmatmul.f32.gmra.mxu0 %v1106
    %v1125 = vpop.f32.mrf.mxu0
    %v1126 = vadd.f32 0.0, %v1125
    %1127 = vdwg.mxu0
    %v1128 = vadd.f32 %v1102, %v1126
    %v1129 = vtanh.pop %v1128
    %v1130 = vxor.u32 %v1128, 2147483648
    %v1131 = vmul.f32 %v1130, 1.442695
    %v1132 = vpow.pop %v1131
    %v1133 = vadd.f32 %v1132, 1.0
    %v1134 = vrcp.pop %v1133
    %v1135 = vmul.f32 %v1133, %v1134
    %v1136 = vsub.f32 1.0, %v1135
    %v1137 = vmul.f32 %v1134, %v1136
    %v1138 = vadd.f32 %v1134, %v1137
    %vm1139 = vweird.f32 %v1133
    %vm1140 = vweird.f32 %v1134
    %vm1141 = vmor %vm1139, %vm1140
    %v1142 = vsel %vm1141, %v1134, %v1138
    %v1143 = vand.u32 2147483647, %v1133
    %vm1144 = vcmp.eq.f32.partialorder %v1143, 8.507059e+37
    %v1145 = vand.u32 %v1133, 2147483648
    %v1146 = vor.u32 1.1754944e-38, %v1145
    %v1147 = vsel %vm1144, %v1146, %v1142
    %v1148 = vmul.f32 1.0, %v1147
    %v1149 = vmul.f32 %v1148, %v1090
    %1151 = vrot.lane.b32.xlu0 %v1129, 32
    %v1152 = vpop.permute.xlu0 %1151
    %v1154 = vmul.f32 %v1148, %v1152
    %1156 = vrot.lane.b32.xlu0 %v1154, 32
    %v1157 = vpop.permute.xlu0 %1156
    %v1159 = vadd.f32 %v1149, %v1157
    %v1160 = vtanh.pop %v1159
    %1162 = vrot.lane.b32.xlu0 %v1160, 32
    %v1163 = vpop.permute.xlu0 %1162
    %v1165 = vmul.f32 %v1148, %v1163
    %s1166 = sld [smem:[#allocation8 + $0x4]]
    %v1167 = vtanh.pop %v1165
    %v1168 = vstv %s1166
    %v1169 = vmul.f32 %v1168, %v1167
    %v1170 = vadd.f32 %v1101, %v1169
    %v1171 = vld [vmem:[#allocation3 + $0x28] sm:$0xff]
    %1173 = vrot.lane.b32.xlu0 %v1165, 32
    %v1174 = vpop.permute.xlu0 %1173
    %v1175 = vsel %vm144, %v1174, 0
    %1177 = vmatpush.msra.mxu0 0.0
    %1178 = vmatpush.msra.mxu0 0.0
    %1179 = vmatpush.msra.mxu0 0.0
    %1180 = vmatpush.msra.mxu0 0.0
    %1181 = vmatpush.msra.mxu0 0.0
    %1182 = vmatpush.msra.mxu0 0.0
    %1183 = vmatpush.msra.mxu0 0.0
    %1184 = vmatpush.msra.mxu0 0.0
    %1185 = vmatpush.msra.mxu0 0.0
    %1186 = vmatpush.msra.mxu0 0.0
    %1187 = vmatpush.msra.mxu0 0.0
    %1188 = vmatpush.msra.mxu0 0.0
    %1189 = vmatpush.msra.mxu0 %v830
    %1190 = vmatpush.msra.mxu0 %v829
    %1191 = vmatpush.msra.mxu0 %v828
    %1192 = vmatpush.msra.mxu0 %v827
    %1193 = vmatmul.f32.gmra.mxu0 %v1175
    %v1194 = vpop.f32.mrf.mxu0
    %v1195 = vadd.f32 0.0, %v1194
    %1196 = vdwg.mxu0
    %v1197 = vadd.f32 %v1171, %v1195
    %v1198 = vtanh.pop %v1197
    %v1199 = vxor.u32 %v1197, 2147483648
    %v1200 = vmul.f32 %v1199, 1.442695
    %v1201 = vpow.pop %v1200
    %v1202 = vadd.f32 %v1201, 1.0
    %v1203 = vrcp.pop %v1202
    %v1204 = vmul.f32 %v1202, %v1203
    %v1205 = vsub.f32 1.0, %v1204
    %v1206 = vmul.f32 %v1203, %v1205
    %v1207 = vadd.f32 %v1203, %v1206
    %vm1208 = vweird.f32 %v1202
    %vm1209 = vweird.f32 %v1203
    %vm1210 = vmor %vm1208, %vm1209
    %v1211 = vsel %vm1210, %v1203, %v1207
    %v1212 = vand.u32 2147483647, %v1202
    %vm1213 = vcmp.eq.f32.partialorder %v1212, 8.507059e+37
    %v1214 = vand.u32 %v1202, 2147483648
    %v1215 = vor.u32 1.1754944e-38, %v1214
    %v1216 = vsel %vm1213, %v1215, %v1211
    %v1217 = vmul.f32 1.0, %v1216
    %v1218 = vmul.f32 %v1217, %v1159
    %1220 = vrot.lane.b32.xlu0 %v1198, 32
    %v1221 = vpop.permute.xlu0 %1220
    %v1223 = vmul.f32 %v1217, %v1221
    %1225 = vrot.lane.b32.xlu0 %v1223, 32
    %v1226 = vpop.permute.xlu0 %1225
    %v1228 = vadd.f32 %v1218, %v1226
    %v1229 = vtanh.pop %v1228
    %1231 = vrot.lane.b32.xlu0 %v1229, 32
    %v1232 = vpop.permute.xlu0 %1231
    %v1234 = vmul.f32 %v1217, %v1232
    %s1235 = sld [smem:[#allocation8 + $0x5]]
    %v1236 = vtanh.pop %v1234
    %v1237 = vstv %s1235
    %v1238 = vmul.f32 %v1237, %v1236
    %v1239 = vadd.f32 %v1170, %v1238
    %v1240 = vld [vmem:[#allocation3 + $0x30] sm:$0xff]
    %1242 = vrot.lane.b32.xlu0 %v1234, 32
    %v1243 = vpop.permute.xlu0 %1242
    %v1244 = vsel %vm144, %v1243, 0
    %1246 = vmatpush.msra.mxu0 0.0
    %1247 = vmatpush.msra.mxu0 0.0
    %1248 = vmatpush.msra.mxu0 0.0
    %1249 = vmatpush.msra.mxu0 0.0
    %1250 = vmatpush.msra.mxu0 0.0
    %1251 = vmatpush.msra.mxu0 0.0
    %1252 = vmatpush.msra.mxu0 0.0
    %1253 = vmatpush.msra.mxu0 0.0
    %1254 = vmatpush.msra.mxu0 0.0
    %1255 = vmatpush.msra.mxu0 0.0
    %1256 = vmatpush.msra.mxu0 0.0
    %1257 = vmatpush.msra.mxu0 0.0
    %1258 = vmatpush.msra.mxu0 %v830
    %1259 = vmatpush.msra.mxu0 %v829
    %1260 = vmatpush.msra.mxu0 %v828
    %1261 = vmatpush.msra.mxu0 %v827
    %1262 = vmatmul.f32.gmra.mxu0 %v1244
    %v1263 = vpop.f32.mrf.mxu0
    %v1264 = vadd.f32 0.0, %v1263
    %1265 = vdwg.mxu0
    %v1266 = vadd.f32 %v1240, %v1264
    %v1267 = vtanh.pop %v1266
    %v1268 = vxor.u32 %v1266, 2147483648
    %v1269 = vmul.f32 %v1268, 1.442695
    %v1270 = vpow.pop %v1269
    %v1271 = vadd.f32 %v1270, 1.0
    %v1272 = vrcp.pop %v1271
    %v1273 = vmul.f32 %v1271, %v1272
    %v1274 = vsub.f32 1.0, %v1273
    %v1275 = vmul.f32 %v1272, %v1274
    %v1276 = vadd.f32 %v1272, %v1275
    %vm1277 = vweird.f32 %v1271
    %vm1278 = vweird.f32 %v1272
    %vm1279 = vmor %vm1277, %vm1278
    %v1280 = vsel %vm1279, %v1272, %v1276
    %v1281 = vand.u32 2147483647, %v1271
    %vm1282 = vcmp.eq.f32.partialorder %v1281, 8.507059e+37
    %v1283 = vand.u32 %v1271, 2147483648
    %v1284 = vor.u32 1.1754944e-38, %v1283
    %v1285 = vsel %vm1282, %v1284, %v1280
    %v1286 = vmul.f32 1.0, %v1285
    %v1287 = vmul.f32 %v1286, %v1228
    %1289 = vrot.lane.b32.xlu0 %v1267, 32
    %v1290 = vpop.permute.xlu0 %1289
    %v1292 = vmul.f32 %v1286, %v1290
    %1294 = vrot.lane.b32.xlu0 %v1292, 32
    %v1295 = vpop.permute.xlu0 %1294
    %v1297 = vadd.f32 %v1287, %v1295
    %v1298 = vtanh.pop %v1297
    %1300 = vrot.lane.b32.xlu0 %v1298, 32
    %v1301 = vpop.permute.xlu0 %1300
    %v1303 = vmul.f32 %v1286, %v1301
    %s1304 = sld [smem:[#allocation8 + $0x6]]
    %v1305 = vtanh.pop %v1303
    %v1306 = vstv %s1304
    %v1307 = vmul.f32 %v1306, %v1305
    %v1308 = vadd.f32 %v1239, %v1307
    %v1309 = vld [vmem:[#allocation3 + $0x38] sm:$0xff]
    %1311 = vrot.lane.b32.xlu0 %v1303, 32
    %v1312 = vpop.permute.xlu0 %1311
    %v1313 = vsel %vm144, %v1312, 0
    %1315 = vmatpush.msra.mxu0 0.0
    %1316 = vmatpush.msra.mxu0 0.0
    %1317 = vmatpush.msra.mxu0 0.0
    %1318 = vmatpush.msra.mxu0 0.0
    %1319 = vmatpush.msra.mxu0 0.0
    %1320 = vmatpush.msra.mxu0 0.0
    %1321 = vmatpush.msra.mxu0 0.0
    %1322 = vmatpush.msra.mxu0 0.0
    %1323 = vmatpush.msra.mxu0 0.0
    %1324 = vmatpush.msra.mxu0 0.0
    %1325 = vmatpush.msra.mxu0 0.0
    %1326 = vmatpush.msra.mxu0 0.0
    %1327 = vmatpush.msra.mxu0 %v830
    %1328 = vmatpush.msra.mxu0 %v829
    %1329 = vmatpush.msra.mxu0 %v828
    %1330 = vmatpush.msra.mxu0 %v827
    %1331 = vmatmul.f32.gmra.mxu0 %v1313
    %v1332 = vpop.f32.mrf.mxu0
    %v1333 = vadd.f32 0.0, %v1332
    %1334 = vdwg.mxu0
    %v1335 = vadd.f32 %v1309, %v1333
    %v1336 = vtanh.pop %v1335
    %v1337 = vxor.u32 %v1335, 2147483648
    %v1338 = vmul.f32 %v1337, 1.442695
    %v1339 = vpow.pop %v1338
    %v1340 = vadd.f32 %v1339, 1.0
    %v1341 = vrcp.pop %v1340
    %v1342 = vmul.f32 %v1340, %v1341
    %v1343 = vsub.f32 1.0, %v1342
    %v1344 = vmul.f32 %v1341, %v1343
    %v1345 = vadd.f32 %v1341, %v1344
    %vm1346 = vweird.f32 %v1340
    %vm1347 = vweird.f32 %v1341
    %vm1348 = vmor %vm1346, %vm1347
    %v1349 = vsel %vm1348, %v1341, %v1345
    %v1350 = vand.u32 2147483647, %v1340
    %vm1351 = vcmp.eq.f32.partialorder %v1350, 8.507059e+37
    %v1352 = vand.u32 %v1340, 2147483648
    %v1353 = vor.u32 1.1754944e-38, %v1352
    %v1354 = vsel %vm1351, %v1353, %v1349
    %v1355 = vmul.f32 1.0, %v1354
    %v1356 = vmul.f32 %v1355, %v1297
    %1358 = vrot.lane.b32.xlu0 %v1336, 32
    %v1359 = vpop.permute.xlu0 %1358
    %v1361 = vmul.f32 %v1355, %v1359
    %1363 = vrot.lane.b32.xlu0 %v1361, 32
    %v1364 = vpop.permute.xlu0 %1363
    %v1366 = vadd.f32 %v1356, %v1364
    %v1367 = vtanh.pop %v1366
    %1369 = vrot.lane.b32.xlu0 %v1367, 32
    %v1370 = vpop.permute.xlu0 %1369
    %v1372 = vmul.f32 %v1355, %v1370
    %s1373 = sld [smem:[#allocation8 + $0x7]]
    %v1374 = vtanh.pop %v1372
    %v1375 = vstv %s1373
    %v1376 = vmul.f32 %v1375, %v1374
    %v1377 = vadd.f32 %v1308, %v1376
    %s1378 = sld [smem:[#allocation8 + $0x8]]
    %v1379 = vstv %s1378
    %v1380 = vadd.f32 %v1377, %v1379
    %v1381 = vtanh.pop %v1380
    %v1382 = vld [vmem:[#allocation4 + $0x70] sm:$0xff]
    %v1383 = vld [vmem:[#allocation4 + $0x78] sm:$0xff]
    %v1384 = vld [vmem:[#allocation4 + $0x80] sm:$0xff]
    %v1385 = vld [vmem:[#allocation4 + $0x88] sm:$0xff]
    %v1386 = vld [vmem:[#allocation4 + $0x90] sm:$0x1]
    %v1387 = vperm.slane %v1386, 0
    %1389 = vrot.lane.b32.xlu0 %v1381, 32
    %v1390 = vpop.permute.xlu0 %1389
    %v1391 = vsel %vm144, %v1390, 0
    %1393 = vmatpush.msra.mxu0 0.0
    %1394 = vmatpush.msra.mxu0 0.0
    %1395 = vmatpush.msra.mxu0 0.0
    %1396 = vmatpush.msra.mxu0 0.0
    %1397 = vmatpush.msra.mxu0 0.0
    %1398 = vmatpush.msra.mxu0 0.0
    %1399 = vmatpush.msra.mxu0 0.0
    %1400 = vmatpush.msra.mxu0 0.0
    %1401 = vmatpush.msra.mxu0 0.0
    %1402 = vmatpush.msra.mxu0 0.0
    %1403 = vmatpush.msra.mxu0 0.0
    %1404 = vmatpush.msra.mxu0 0.0
    %1405 = vmatpush.msra.mxu0 %v1385
    %1406 = vmatpush.msra.mxu0 %v1384
    %1407 = vmatpush.msra.mxu0 %v1383
    %1408 = vmatpush.msra.mxu0 %v1382
    %1409 = vmatmul.f32.gmra.mxu0 %v1391
    %v1410 = vpop.f32.mrf.mxu0
    %v1411 = vadd.f32 %v1387, %v1410
    %1412 = vdwg.mxu0
    %v1413 = vtanh.pop %v1411
    %1414 = vst [vmem:[#allocation9] sm:$0xff] %v1413
    // Predicated region
    $region22: #{tpu_custom_call.1} parent=1 // pred_check
      _
    $region23: #{tpu_custom_call.1} parent=1 // pred_check_branch
      %1416 = sbr.rel (0) target = $region25
    $region24: #{tpu_custom_call.1} parent=1 // pred_region
      %1418 = vsyncadd [#allocation6], 0
      %s1420 = sshll.u32 [#allocation9], 4
      %s1421 = int_to_ptr.vmem [resolvable:$true] %s1420
      %s1422 = sshll.u32 %s3, 4
      %s1423 = int_to_ptr.hbm [resolvable:$true] %s1422
      %1425 = dma.vmem_to_hbm [thread:$0]  %s1421, 128, %s1423, [#allocation6]
    $region25: #{tpu_custom_call.1} parent=1 // pred_fallthru
      _
    // Predicated region
    $region26: #{tpu_custom_call.1} parent=1 // pred_check
      _
    $region27: #{tpu_custom_call.1} parent=1 // pred_check_branch
      %1427 = sbr.rel (0) target = $region29
    $region28: #{tpu_custom_call.1} parent=1 // pred_region
      %1429 = dma.done [#allocation6], 128
    $region29: #{tpu_custom_call.1} parent=1 // pred_fallthru
      _
    %1430 = vsyncpa [#allocation5], 1
    %1431 = vsyncpa [#allocation6], 1
    %1432 = vsyncpa [#allocation7], 1

</llo_original>
